<compile_context>
chip_gen: v6e
topology: v6e:2x2x1
jax: 0.10.0
libtpu: 0.0.40
codegen_flags: <defaults>
</compile_context>

<pallas_src>
import functools

import jax
import jax.numpy as jnp
from jax import lax
from jax.experimental import pallas as pl
from jax.experimental.pallas import tpu as pltpu


def _self_attention_kernel(x_q_ref, x_kv_ref, wq_ref, bq_ref, wk_ref, bk_ref,
                           wv_ref, bv_ref, gamma_ref, o_ref,
                           q_scr, m_scr, l_scr, acc_scr, *, scale):
    """One grid step: (batch block b, query tile qi, kv tile ki)."""
    ki = pl.program_id(2)
    nk = pl.num_programs(2)

    bb, tq, C = x_q_ref.shape
    tk = x_kv_ref.shape[1]
    c8 = wq_ref.shape[1]

    # --- init on first KV tile: project Q once per (b, qi), reset m/l/acc ---
    @pl.when(ki == 0)
    def _():
        xq2 = x_q_ref[...].reshape(bb * tq, C)
        q = jnp.dot(xq2, wq_ref[...],
                    preferred_element_type=jnp.float32) + bq_ref[...]   # (bb*tq, c8)
        q_scr[...] = (q * scale).reshape(bb, tq, c8)                    # scale folded into Q
        m_scr[...] = jnp.full(m_scr.shape, -jnp.inf, jnp.float32)
        l_scr[...] = jnp.zeros(l_scr.shape, jnp.float32)
        acc_scr[...] = jnp.zeros(acc_scr.shape, jnp.float32)

    # --- K / V projections for this KV tile (no transposes: x @ W) ---
    xk2 = x_kv_ref[...].reshape(bb * tk, C)
    k = (jnp.dot(xk2, wk_ref[...], preferred_element_type=jnp.float32)
         + bk_ref[...]).reshape(bb, tk, c8)
    v = (jnp.dot(xk2, wv_ref[...], preferred_element_type=jnp.float32)
         + bv_ref[...]).reshape(bb, tk, C)

    # energy[b, i, j] = <q_i, k_j>  (contract last dims; K in native layout)
    s = lax.dot_general(q_scr[...], k,
                        dimension_numbers=(((2,), (2,)), ((0,), (0,))),
                        preferred_element_type=jnp.float32)             # (bb, tq, tk)

    # --- online softmax update ---
    m_prev = m_scr[...]
    m_new = jnp.maximum(m_prev, jnp.max(s, axis=-1, keepdims=True))
    alpha = jnp.exp(m_prev - m_new)
    p = jnp.exp(s - m_new)
    l_scr[...] = alpha * l_scr[...] + jnp.sum(p, axis=-1, keepdims=True)
    pv = lax.dot_general(p, v,
                         dimension_numbers=(((2,), (1,)), ((0,), (0,))),
                         preferred_element_type=jnp.float32)            # (bb, tq, C)
    acc_scr[...] = alpha * acc_scr[...] + pv
    m_scr[...] = m_new

    # --- finalize on last KV tile: normalize, gamma * out + residual ---
    @pl.when(ki == nk - 1)
    def _():
        inv_l = pl.reciprocal(l_scr[...], approx=False)
        out = acc_scr[...] * inv_l
        o_ref[...] = gamma_ref[0, 0] * out + x_q_ref[...]


def _pick_tile(total, cap):
    """Largest tile <= cap that divides `total` and is a multiple of 8;
    full extent if total <= cap or no such divisor exists."""
    if total <= cap:
        return total
    for t in range(min(cap, total), 7, -1):
        if total % t == 0 and t % 8 == 0:
            return t
    return total


def _pick_batch_block(B, C, tq, tk, budget_bytes=2 * 1024 * 1024):
    """How many batch elements to process per grid step (amortize ~0.35us/step)."""
    c8 = max(C // 8, 1)
    per_b = 4 * (2 * tq * C + tk * C + tq * tk + tq * c8 + tk * c8 + tk * C)
    cap = max(1, budget_bytes // max(per_b, 1))
    for bb in range(min(B, cap), 0, -1):
        if B % bb == 0:
            return bb
    return 1


def self_attention_pallas(x_nchw, params, *, q_tile_cap=256, k_tile_cap=256,
                          vmem_limit_bytes=64 * 1024 * 1024):
    """x_nchw: (B, C, H, W) float32.  Returns (B, C, H, W) float32."""
    B, C, H, W = x_nchw.shape
    S = H * W
    C8 = C // 8
    scale = float(C8) ** (-0.5)

    # NCHW -> (B, S, C)
    x_bsc = jnp.transpose(x_nchw, (0, 2, 3, 1)).reshape(B, S, C)

    # Pre-transpose weights once in the wrapper (no in-kernel .T).
    wq_t = jnp.transpose(params["wq"])          # (C, C8)
    wk_t = jnp.transpose(params["wk"])          # (C, C8)
    wv_t = jnp.transpose(params["wv"])          # (C, C)
    bq, bk, bv = params["bq"], params["bk"], params["bv"]
    gamma = params["gamma"]                     # (1, 1)

    tq = _pick_tile(S, q_tile_cap)
    tk = _pick_tile(S, k_tile_cap)
    bb = _pick_batch_block(B, C, tq, tk)
    grid = (B // bb, S // tq, S // tk)

    kernel = functools.partial(_self_attention_kernel, scale=scale)

    flops = 2 * B * S * (2 * C * C8 + C * C + S * C8 + S * C)
    cost = pl.CostEstimate(
        flops=flops,
        transcendentals=B * S * S,
        bytes_accessed=4 * (3 * B * S * C + 2 * C * C8 + C * C + 2 * C8 + C + 1),
    )

    out_bsc = pl.pallas_call(
        kernel,
        out_shape=jax.ShapeDtypeStruct((B, S, C), jnp.float32),
        grid_spec=pltpu.PrefetchScalarGridSpec(
            num_scalar_prefetch=0,
            grid=grid,
            in_specs=[
                pl.BlockSpec((bb, tq, C), lambda b, qi, ki: (b, qi, 0)),   # x (Q / residual)
                pl.BlockSpec((bb, tk, C), lambda b, qi, ki: (b, ki, 0)),   # x (K / V)
                pl.BlockSpec((C, C8), lambda b, qi, ki: (0, 0)),           # Wq^T
                pl.BlockSpec((1, C8), lambda b, qi, ki: (0, 0)),           # bq
                pl.BlockSpec((C, C8), lambda b, qi, ki: (0, 0)),           # Wk^T
                pl.BlockSpec((1, C8), lambda b, qi, ki: (0, 0)),           # bk
                pl.BlockSpec((C, C), lambda b, qi, ki: (0, 0)),            # Wv^T
                pl.BlockSpec((1, C), lambda b, qi, ki: (0, 0)),            # bv
                pl.BlockSpec(memory_space=pltpu.MemorySpace.SMEM),         # gamma
            ],
            out_specs=pl.BlockSpec((bb, tq, C), lambda b, qi, ki: (b, qi, 0)),
            scratch_shapes=[
                pltpu.VMEM((bb, tq, C8), jnp.float32),   # scaled Q (per (b, qi))
                pltpu.VMEM((bb, tq, 1), jnp.float32),    # running max
                pltpu.VMEM((bb, tq, 1), jnp.float32),    # running denom
                pltpu.VMEM((bb, tq, C), jnp.float32),    # output accumulator
            ],
        ),
        compiler_params=pltpu.CompilerParams(
            dimension_semantics=("parallel", "parallel", "arbitrary"),
            vmem_limit_bytes=vmem_limit_bytes,
        ),
        cost_estimate=cost,
    )(x_bsc, x_bsc, wq_t, bq, wk_t, bk, wv_t, bv, gamma)

    # (B, S, C) -> NCHW
    return jnp.transpose(out_bsc.reshape(B, H, W, C), (0, 3, 1, 2))


def self_attention_ref(x_nchw, params):
    """Plain-JAX reference mirroring the PyTorch forward (for verification)."""
    B, C, H, W = x_nchw.shape
    S = H * W
    C8 = C // 8
    scale = float(C8) ** (-0.5)
    x = jnp.transpose(x_nchw, (0, 2, 3, 1)).reshape(B, S, C)           # (B,S,C)
    q = jnp.einsum("bsc,oc->bso", x, params["wq"]) + params["bq"]      # (B,S,C8)
    k = jnp.einsum("bsc,oc->bso", x, params["wk"]) + params["bk"]      # (B,S,C8)
    v = jnp.einsum("bsc,oc->bso", x, params["wv"]) + params["bv"]      # (B,S,C)
    energy = jnp.einsum("bio,bjo->bij", q, k) * scale                  # (B,S,S)
    attn = jax.nn.softmax(energy, axis=-1)
    out = jnp.einsum("bij,bjc->bic", attn, v)                          # (B,S,C)
    y = params["gamma"][0, 0] * out + x
    return jnp.transpose(y.reshape(B, H, W, C), (0, 3, 1, 2))


def make_params(key, channels):
    C = channels
    C8 = C // 8
    ks = jax.random.split(key, 6)
    scale_q = 1.0 / jnp.sqrt(C)
    return {
        "wq": jax.random.uniform(ks[0], (C8, C), jnp.float32, -scale_q, scale_q),
        "bq": jax.random.uniform(ks[1], (1, C8), jnp.float32, -scale_q, scale_q),
        "wk": jax.random.uniform(ks[2], (C8, C), jnp.float32, -scale_q, scale_q),
        "bk": jax.random.uniform(ks[3], (1, C8), jnp.float32, -scale_q, scale_q),
        "wv": jax.random.uniform(ks[4], (C, C), jnp.float32, -scale_q, scale_q),
        "bv": jax.random.uniform(ks[5], (1, C), jnp.float32, -scale_q, scale_q),
        "gamma": jnp.full((1, 1), 0.1, jnp.float32),
    }


if __name__ == "__main__":
    key = jax.random.PRNGKey(0)
    kx1, kp1, kx2, kp2 = jax.random.split(key, 4)

    # Small shape: whole batch and full S in a single grid step.
    B, C, H, W = 2, 16, 8, 8
    x = jax.random.normal(kx1, (B, C, H, W), jnp.float32)
    params = make_params(kp1, C)
    out = jax.block_until_ready(self_attention_pallas(x, params))
    ref = self_attention_ref(x, params)
    assert out.shape == (B, C, H, W)
    assert jnp.allclose(out, ref, atol=1e-4, rtol=1e-4), "mismatch vs reference (small)"

    # Larger spatial extent to exercise the flash (multi query/KV tile) path.
    B2, C2, H2, W2 = 2, 32, 16, 24          # S = 384 -> 3x3 tiles of 128 with caps below
    x2 = jax.random.normal(kx2, (B2, C2, H2, W2), jnp.float32)
    params2 = make_params(kp2, C2)
    out2 = jax.block_until_ready(
        self_attention_pallas(x2, params2, q_tile_cap=128, k_tile_cap=128))
    ref2 = self_attention_ref(x2, params2)
    assert jnp.allclose(out2, ref2, atol=1e-4, rtol=1e-4), "mismatch vs reference (tiled)"

    print("KERNEL_OK")
</pallas_src>

<mosaic_0001>
module attributes {stable_mosaic.version = 11 : i64} {
  func.func @_self_attention_kernel(%arg0: i32, %arg1: i32, %arg2: i32, %arg3: memref<2x64x16xf32, #tpu.memory_space<vmem>>, %arg4: memref<2x64x16xf32, #tpu.memory_space<vmem>>, %arg5: memref<16x2xf32, #tpu.memory_space<vmem>>, %arg6: memref<1x2xf32, #tpu.memory_space<vmem>>, %arg7: memref<16x2xf32, #tpu.memory_space<vmem>>, %arg8: memref<1x2xf32, #tpu.memory_space<vmem>>, %arg9: memref<16x16xf32, #tpu.memory_space<vmem>>, %arg10: memref<1x16xf32, #tpu.memory_space<vmem>>, %arg11: memref<1x1xf32, #tpu.memory_space<smem>>, %arg12: memref<2x64x16xf32, #tpu.memory_space<vmem>>, %arg13: memref<2x64x2xf32, #tpu.memory_space<vmem>>, %arg14: memref<2x64x1xf32, #tpu.memory_space<vmem>>, %arg15: memref<2x64x1xf32, #tpu.memory_space<vmem>>, %arg16: memref<2x64x16xf32, #tpu.memory_space<vmem>>) attributes {dimension_semantics = [#tpu.dimension_semantics<parallel>, #tpu.dimension_semantics<parallel>, #tpu.dimension_semantics<arbitrary>], iteration_bounds = array<i64: 1, 1, 1>, scalar_prefetch = 0 : i64, scratch_operands = 4 : i64, tpu.core_type = #tpu.core_type<tc>, window_params = [{transform_indices = @transform_0, window_bounds = array<i64: 2, 64, 16>}, {transform_indices = @transform_1, window_bounds = array<i64: 2, 64, 16>}, {pipeline_mode = #tpu.pipeline_mode<synchronous>, transform_indices = @transform_2, window_bounds = array<i64: 16, 2>}, {pipeline_mode = #tpu.pipeline_mode<synchronous>, transform_indices = @transform_3, window_bounds = array<i64: 1, 2>}, {pipeline_mode = #tpu.pipeline_mode<synchronous>, transform_indices = @transform_4, window_bounds = array<i64: 16, 2>}, {pipeline_mode = #tpu.pipeline_mode<synchronous>, transform_indices = @transform_5, window_bounds = array<i64: 1, 2>}, {pipeline_mode = #tpu.pipeline_mode<synchronous>, transform_indices = @transform_6, window_bounds = array<i64: 16, 16>}, {pipeline_mode = #tpu.pipeline_mode<synchronous>, transform_indices = @transform_7, window_bounds = array<i64: 1, 16>}, {transform_indices = @transform_8, window_bounds = array<i64: 1, 1>}, {transform_indices = @transform_9, window_bounds = array<i64: 2, 64, 16>}]} {
    %c0_i32 = arith.constant 0 : i32
    %0 = arith.cmpi eq, %arg2, %c0_i32 : i32
    %1 = arith.extui %0 : i1 to i32
    %c0_i32_0 = arith.constant 0 : i32
    %2 = arith.cmpi ne, %1, %c0_i32_0 : i32
    scf.if %2 {
      %c0_39 = arith.constant 0 : index
      %c0_40 = arith.constant 0 : index
      %c0_41 = arith.constant 0 : index
      %44 = vector.load %arg3[%c0_39, %c0_40, %c0_41] : memref<2x64x16xf32, #tpu.memory_space<vmem>>, vector<2x64x16xf32>
      %45 = vector.shape_cast %44 : vector<2x64x16xf32> to vector<128x16xf32>
      %c0_42 = arith.constant 0 : index
      %c0_43 = arith.constant 0 : index
      %46 = vector.load %arg5[%c0_42, %c0_43] : memref<16x2xf32, #tpu.memory_space<vmem>>, vector<16x2xf32>
      %cst_44 = arith.constant dense<0.000000e+00> : vector<128x2xf32>
      %47 = tpu.matmul %45, %46, %cst_44 {dimension_numbers = #tpu.dot_dimension_numbers<[1], [0], [0], [1], [0, 0, 1, 1], [], []>} : vector<128x16xf32>, vector<16x2xf32>, vector<128x2xf32> -> vector<128x2xf32>
      %c0_45 = arith.constant 0 : index
      %c0_46 = arith.constant 0 : index
      %48 = vector.load %arg6[%c0_45, %c0_46] : memref<1x2xf32, #tpu.memory_space<vmem>>, vector<1x2xf32>
      %49 = vector.broadcast %48 : vector<1x2xf32> to vector<128x2xf32>
      %50 = arith.addf %47, %49 : vector<128x2xf32>
      %cst_47 = arith.constant 0.707106769 : f32
      %51 = vector.broadcast %cst_47 : f32 to vector<128x2xf32>
      %52 = arith.mulf %50, %51 : vector<128x2xf32>
      %53 = vector.shape_cast %52 : vector<128x2xf32> to vector<2x64x2xf32>
      %c0_48 = arith.constant 0 : index
      %c0_49 = arith.constant 0 : index
      %c0_50 = arith.constant 0 : index
      %54 = vector.load %arg13[%c0_48, %c0_49, %c0_50] : memref<2x64x2xf32, #tpu.memory_space<vmem>>, vector<2x64x2xf32>
      tpu.vector_store %arg13[%c0_48, %c0_49, %c0_50], %53 {strides = array<i32>} : memref<2x64x2xf32, #tpu.memory_space<vmem>>, vector<2x64x2xf32>,
      %cst_51 = arith.constant 0xFF800000 : f32
      %55 = vector.broadcast %cst_51 : f32 to vector<2x64x1xf32>
      %c0_52 = arith.constant 0 : index
      %c0_53 = arith.constant 0 : index
      %c0_54 = arith.constant 0 : index
      %56 = vector.load %arg14[%c0_52, %c0_53, %c0_54] : memref<2x64x1xf32, #tpu.memory_space<vmem>>, vector<2x64x1xf32>
      tpu.vector_store %arg14[%c0_52, %c0_53, %c0_54], %55 {strides = array<i32>} : memref<2x64x1xf32, #tpu.memory_space<vmem>>, vector<2x64x1xf32>,
      %cst_55 = arith.constant 0.000000e+00 : f32
      %57 = vector.broadcast %cst_55 : f32 to vector<2x64x1xf32>
      %c0_56 = arith.constant 0 : index
      %c0_57 = arith.constant 0 : index
      %c0_58 = arith.constant 0 : index
      %58 = vector.load %arg15[%c0_56, %c0_57, %c0_58] : memref<2x64x1xf32, #tpu.memory_space<vmem>>, vector<2x64x1xf32>
      tpu.vector_store %arg15[%c0_56, %c0_57, %c0_58], %57 {strides = array<i32>} : memref<2x64x1xf32, #tpu.memory_space<vmem>>, vector<2x64x1xf32>,
      %cst_59 = arith.constant 0.000000e+00 : f32
      %59 = vector.broadcast %cst_59 : f32 to vector<2x64x16xf32>
      %c0_60 = arith.constant 0 : index
      %c0_61 = arith.constant 0 : index
      %c0_62 = arith.constant 0 : index
      %60 = vector.load %arg16[%c0_60, %c0_61, %c0_62] : memref<2x64x16xf32, #tpu.memory_space<vmem>>, vector<2x64x16xf32>
      tpu.vector_store %arg16[%c0_60, %c0_61, %c0_62], %59 {strides = array<i32>} : memref<2x64x16xf32, #tpu.memory_space<vmem>>, vector<2x64x16xf32>,
    } else {
    }
    %c0 = arith.constant 0 : index
    %c0_1 = arith.constant 0 : index
    %c0_2 = arith.constant 0 : index
    %3 = vector.load %arg4[%c0, %c0_1, %c0_2] : memref<2x64x16xf32, #tpu.memory_space<vmem>>, vector<2x64x16xf32>
    %4 = vector.shape_cast %3 : vector<2x64x16xf32> to vector<128x16xf32>
    %c0_3 = arith.constant 0 : index
    %c0_4 = arith.constant 0 : index
    %5 = vector.load %arg7[%c0_3, %c0_4] : memref<16x2xf32, #tpu.memory_space<vmem>>, vector<16x2xf32>
    %cst = arith.constant dense<0.000000e+00> : vector<128x2xf32>
    %6 = tpu.matmul %4, %5, %cst {dimension_numbers = #tpu.dot_dimension_numbers<[1], [0], [0], [1], [0, 0, 1, 1], [], []>} : vector<128x16xf32>, vector<16x2xf32>, vector<128x2xf32> -> vector<128x2xf32>
    %c0_5 = arith.constant 0 : index
    %c0_6 = arith.constant 0 : index
    %7 = vector.load %arg8[%c0_5, %c0_6] : memref<1x2xf32, #tpu.memory_space<vmem>>, vector<1x2xf32>
    %8 = vector.broadcast %7 : vector<1x2xf32> to vector<128x2xf32>
    %9 = arith.addf %6, %8 : vector<128x2xf32>
    %10 = vector.shape_cast %9 : vector<128x2xf32> to vector<2x64x2xf32>
    %c0_7 = arith.constant 0 : index
    %c0_8 = arith.constant 0 : index
    %11 = vector.load %arg9[%c0_7, %c0_8] : memref<16x16xf32, #tpu.memory_space<vmem>>, vector<16x16xf32>
    %cst_9 = arith.constant dense<0.000000e+00> : vector<128x16xf32>
    %12 = tpu.matmul %4, %11, %cst_9 {dimension_numbers = #tpu.dot_dimension_numbers<[1], [0], [0], [1], [0, 0, 1, 1], [], []>} : vector<128x16xf32>, vector<16x16xf32>, vector<128x16xf32> -> vector<128x16xf32>
    %c0_10 = arith.constant 0 : index
    %c0_11 = arith.constant 0 : index
    %13 = vector.load %arg10[%c0_10, %c0_11] : memref<1x16xf32, #tpu.memory_space<vmem>>, vector<1x16xf32>
    %14 = vector.broadcast %13 : vector<1x16xf32> to vector<128x16xf32>
    %15 = arith.addf %12, %14 : vector<128x16xf32>
    %16 = vector.shape_cast %15 : vector<128x16xf32> to vector<2x64x16xf32>
    %c0_12 = arith.constant 0 : index
    %c0_13 = arith.constant 0 : index
    %c0_14 = arith.constant 0 : index
    %17 = vector.load %arg13[%c0_12, %c0_13, %c0_14] : memref<2x64x2xf32, #tpu.memory_space<vmem>>, vector<2x64x2xf32>
    %cst_15 = arith.constant dense<0.000000e+00> : vector<2x64x64xf32>
    %18 = tpu.matmul %17, %10, %cst_15 {dimension_numbers = #tpu.dot_dimension_numbers<[2], [2], [1], [1], [0, 0, 0, 1, 1, 1], [0], [0]>} : vector<2x64x2xf32>, vector<2x64x2xf32>, vector<2x64x64xf32> -> vector<2x64x64xf32>
    %c0_16 = arith.constant 0 : index
    %c0_17 = arith.constant 0 : index
    %c0_18 = arith.constant 0 : index
    %19 = vector.load %arg14[%c0_16, %c0_17, %c0_18] : memref<2x64x1xf32, #tpu.memory_space<vmem>>, vector<2x64x1xf32>
    %cst_19 = arith.constant dense<0xFF800000> : vector<2x64xf32>
    %20 = vector.multi_reduction <maximumf>, %18, %cst_19 [2] : vector<2x64x64xf32> to vector<2x64xf32>
    %21 = vector.shape_cast %20 : vector<2x64xf32> to vector<2x64x1xf32>
    %22 = arith.maximumf %19, %21 : vector<2x64x1xf32>
    %23 = arith.subf %19, %22 : vector<2x64x1xf32>
    %24 = math.exp %23 : vector<2x64x1xf32>
    %25 = vector.broadcast %22 : vector<2x64x1xf32> to vector<2x64x64xf32>
    %26 = arith.subf %18, %25 : vector<2x64x64xf32>
    %27 = math.exp %26 : vector<2x64x64xf32>
    %c0_20 = arith.constant 0 : index
    %c0_21 = arith.constant 0 : index
    %c0_22 = arith.constant 0 : index
    %28 = vector.load %arg15[%c0_20, %c0_21, %c0_22] : memref<2x64x1xf32, #tpu.memory_space<vmem>>, vector<2x64x1xf32>
    %29 = arith.mulf %24, %28 : vector<2x64x1xf32>
    %cst_23 = arith.constant dense<0.000000e+00> : vector<2x64xf32>
    %30 = vector.multi_reduction <add>, %27, %cst_23 [2] : vector<2x64x64xf32> to vector<2x64xf32>
    %31 = vector.shape_cast %30 : vector<2x64xf32> to vector<2x64x1xf32>
    %32 = arith.addf %29, %31 : vector<2x64x1xf32>
    %c0_24 = arith.constant 0 : index
    %c0_25 = arith.constant 0 : index
    %c0_26 = arith.constant 0 : index
    %33 = vector.load %arg15[%c0_24, %c0_25, %c0_26] : memref<2x64x1xf32, #tpu.memory_space<vmem>>, vector<2x64x1xf32>
    tpu.vector_store %arg15[%c0_24, %c0_25, %c0_26], %32 {strides = array<i32>} : memref<2x64x1xf32, #tpu.memory_space<vmem>>, vector<2x64x1xf32>,
    %cst_27 = arith.constant dense<0.000000e+00> : vector<2x64x16xf32>
    %34 = tpu.matmul %27, %16, %cst_27 {dimension_numbers = #tpu.dot_dimension_numbers<[2], [1], [1], [2], [0, 0, 0, 1, 1, 2], [0], [0]>} : vector<2x64x64xf32>, vector<2x64x16xf32>, vector<2x64x16xf32> -> vector<2x64x16xf32>
    %c0_28 = arith.constant 0 : index
    %c0_29 = arith.constant 0 : index
    %c0_30 = arith.constant 0 : index
    %35 = vector.load %arg16[%c0_28, %c0_29, %c0_30] : memref<2x64x16xf32, #tpu.memory_space<vmem>>, vector<2x64x16xf32>
    %36 = vector.broadcast %24 : vector<2x64x1xf32> to vector<2x64x16xf32>
    %37 = arith.mulf %36, %35 : vector<2x64x16xf32>
    %38 = arith.addf %37, %34 : vector<2x64x16xf32>
    %c0_31 = arith.constant 0 : index
    %c0_32 = arith.constant 0 : index
    %c0_33 = arith.constant 0 : index
    %39 = vector.load %arg16[%c0_31, %c0_32, %c0_33] : memref<2x64x16xf32, #tpu.memory_space<vmem>>, vector<2x64x16xf32>
    tpu.vector_store %arg16[%c0_31, %c0_32, %c0_33], %38 {strides = array<i32>} : memref<2x64x16xf32, #tpu.memory_space<vmem>>, vector<2x64x16xf32>,
    %c0_34 = arith.constant 0 : index
    %c0_35 = arith.constant 0 : index
    %c0_36 = arith.constant 0 : index
    %40 = vector.load %arg14[%c0_34, %c0_35, %c0_36] : memref<2x64x1xf32, #tpu.memory_space<vmem>>, vector<2x64x1xf32>
    tpu.vector_store %arg14[%c0_34, %c0_35, %c0_36], %22 {strides = array<i32>} : memref<2x64x1xf32, #tpu.memory_space<vmem>>, vector<2x64x1xf32>,
    %c0_i32_37 = arith.constant 0 : i32
    %41 = arith.cmpi eq, %arg2, %c0_i32_37 : i32
    %42 = arith.extui %41 : i1 to i32
    %c0_i32_38 = arith.constant 0 : i32
    %43 = arith.cmpi ne, %42, %c0_i32_38 : i32
    scf.if %43 {
      %c0_39 = arith.constant 0 : index
      %c0_40 = arith.constant 0 : index
      %c0_41 = arith.constant 0 : index
      %44 = vector.load %arg15[%c0_39, %c0_40, %c0_41] : memref<2x64x1xf32, #tpu.memory_space<vmem>>, vector<2x64x1xf32>
      %45 = tpu.reciprocal %44 : vector<2x64x1xf32> -> vector<2x64x1xf32>
      %c0_42 = arith.constant 0 : index
      %c0_43 = arith.constant 0 : index
      %c0_44 = arith.constant 0 : index
      %46 = vector.load %arg16[%c0_42, %c0_43, %c0_44] : memref<2x64x16xf32, #tpu.memory_space<vmem>>, vector<2x64x16xf32>
      %47 = vector.broadcast %45 : vector<2x64x1xf32> to vector<2x64x16xf32>
      %48 = arith.mulf %46, %47 : vector<2x64x16xf32>
      %c0_45 = arith.constant 0 : index
      %c0_46 = arith.constant 0 : index
      %49 = memref.load %arg11[%c0_45, %c0_46] : memref<1x1xf32, #tpu.memory_space<smem>>
      %50 = vector.broadcast %49 : f32 to vector<2x64x16xf32>
      %51 = arith.mulf %50, %48 : vector<2x64x16xf32>
      %c0_47 = arith.constant 0 : index
      %c0_48 = arith.constant 0 : index
      %c0_49 = arith.constant 0 : index
      %52 = vector.load %arg3[%c0_47, %c0_48, %c0_49] : memref<2x64x16xf32, #tpu.memory_space<vmem>>, vector<2x64x16xf32>
      %53 = arith.addf %51, %52 : vector<2x64x16xf32>
      %c0_50 = arith.constant 0 : index
      %c0_51 = arith.constant 0 : index
      %c0_52 = arith.constant 0 : index
      %54 = vector.load %arg12[%c0_50, %c0_51, %c0_52] : memref<2x64x16xf32, #tpu.memory_space<vmem>>, vector<2x64x16xf32>
      tpu.vector_store %arg12[%c0_50, %c0_51, %c0_52], %53 {strides = array<i32>} : memref<2x64x16xf32, #tpu.memory_space<vmem>>, vector<2x64x16xf32>,
    } else {
    }
    return
  }
  func.func @transform_0(%arg0: i32, %arg1: i32, %arg2: i32) -> (i32, i32, i32) {
    %c0_i32 = arith.constant 0 : i32
    %c0_i32_0 = arith.constant 0 : i32
    return %arg0, %arg1, %c0_i32 : i32, i32, i32
  }
  func.func @transform_1(%arg0: i32, %arg1: i32, %arg2: i32) -> (i32, i32, i32) {
    %c0_i32 = arith.constant 0 : i32
    %c0_i32_0 = arith.constant 0 : i32
    return %arg0, %arg2, %c0_i32 : i32, i32, i32
  }
  func.func @transform_2(%arg0: i32, %arg1: i32, %arg2: i32) -> (i32, i32) {
    %c0_i32 = arith.constant 0 : i32
    %c0_i32_0 = arith.constant 0 : i32
    %c0_i32_1 = arith.constant 0 : i32
    return %c0_i32, %c0_i32_0 : i32, i32
  }
  func.func @transform_3(%arg0: i32, %arg1: i32, %arg2: i32) -> (i32, i32) {
    %c0_i32 = arith.constant 0 : i32
    %c0_i32_0 = arith.constant 0 : i32
    %c0_i32_1 = arith.constant 0 : i32
    return %c0_i32, %c0_i32_0 : i32, i32
  }
  func.func @transform_4(%arg0: i32, %arg1: i32, %arg2: i32) -> (i32, i32) {
    %c0_i32 = arith.constant 0 : i32
    %c0_i32_0 = arith.constant 0 : i32
    %c0_i32_1 = arith.constant 0 : i32
    return %c0_i32, %c0_i32_0 : i32, i32
  }
  func.func @transform_5(%arg0: i32, %arg1: i32, %arg2: i32) -> (i32, i32) {
    %c0_i32 = arith.constant 0 : i32
    %c0_i32_0 = arith.constant 0 : i32
    %c0_i32_1 = arith.constant 0 : i32
    return %c0_i32, %c0_i32_0 : i32, i32
  }
  func.func @transform_6(%arg0: i32, %arg1: i32, %arg2: i32) -> (i32, i32) {
    %c0_i32 = arith.constant 0 : i32
    %c0_i32_0 = arith.constant 0 : i32
    %c0_i32_1 = arith.constant 0 : i32
    return %c0_i32, %c0_i32_0 : i32, i32
  }
  func.func @transform_7(%arg0: i32, %arg1: i32, %arg2: i32) -> (i32, i32) {
    %c0_i32 = arith.constant 0 : i32
    %c0_i32_0 = arith.constant 0 : i32
    %c0_i32_1 = arith.constant 0 : i32
    return %c0_i32, %c0_i32_0 : i32, i32
  }
  func.func @transform_8(%arg0: i32, %arg1: i32, %arg2: i32) -> (i32, i32) {
    %c0_i32 = arith.constant 0 : i32
    %c0_i32_0 = arith.constant 0 : i32
    %c0_i32_1 = arith.constant 0 : i32
    return %c0_i32, %c0_i32_0 : i32, i32
  }
  func.func @transform_9(%arg0: i32, %arg1: i32, %arg2: i32) -> (i32, i32, i32) {
    %c0_i32 = arith.constant 0 : i32
    %c0_i32_0 = arith.constant 0 : i32
    return %arg0, %arg1, %c0_i32 : i32, i32, i32
  }
}

</mosaic_0001>

<llo_original>
// kernel: tpu_custom_call.1
$region0: #{tpu_custom_call.1}
  #allocation0 [shape = 'u32[]', space=smem, size = 0x4, offset = 0x4, fixed_abs, tag = 'smem constant byte address 0x4 - core index']
  #allocation1 [shape = 'u32[144,128]{1,0:T(1,128)}', space=vmem, size = 0x12000, scoped, tag = 'internal scratch']
  #allocation2 [shape = 'f32[2,64,2]{2,1,0:T(8,128)}', space=vmem, size = 0x10000, scoped, tag = 'scratch operand']
  #allocation3 [shape = 'f32[2,64,1]{2,1,0:T(8,128)}', space=vmem, size = 0x10000, scoped, tag = 'scratch operand']
  #allocation4 [shape = 'f32[2,64,1]{2,1,0:T(8,128)}', space=vmem, size = 0x10000, scoped, tag = 'scratch operand']
  #allocation5 [shape = 'f32[2,64,16]{2,1,0:T(8,128)}', space=vmem, size = 0x10000, scoped, tag = 'scratch operand']
  #allocation6 [shape = 'f32[1,1]{1,0:T(1,128)S(6)}', space=smem, size = 0x200, scoped, tag = 'scoped memory for tpu_custom_call.1']
  %s0 = inlined_call_operand.vmem [shape: f32[2,64,16], index: 0, kind: input, shape index: {}]
  %s1 = inlined_call_operand.vmem [shape: f32[2,64,16], index: 1, kind: input, shape index: {}]
  %s2 = inlined_call_operand.vmem [shape: f32[16,2], index: 2, kind: input, shape index: {}]
  %s3 = inlined_call_operand.vmem [shape: f32[1,2], index: 3, kind: input, shape index: {}]
  %s4 = inlined_call_operand.vmem [shape: f32[16,2], index: 4, kind: input, shape index: {}]
  %s5 = inlined_call_operand.vmem [shape: f32[1,2], index: 5, kind: input, shape index: {}]
  %s6 = inlined_call_operand.vmem [shape: f32[16,16], index: 6, kind: input, shape index: {}]
  %s7 = inlined_call_operand.vmem [shape: f32[1,16], index: 7, kind: input, shape index: {}]
  %s8 = inlined_call_operand.<no memory space> [shape: f32[1,1], index: 8, kind: input, shape index: {}]
  %s9 = inlined_call_operand.vmem [shape: f32[2,64,16], index: 9, kind: output, shape index: {}]
  %s10 = sld [smem:[#allocation0]]
  $region54: #{tpu_custom_call.1} parent=0
    _
  %s12 = ssub.s32 1, %s10
  %s13 = scalar_select 0, %s12, %s10
  %14 = sst [smem:[#allocation6]] %s8
  // Predicated region
  $region2: #{tpu_custom_call.1} parent=0 // pred_check
    _
  $region3: #{tpu_custom_call.1} parent=0 // pred_check_branch
    %16 = sbr.rel (0) target = $region5
  $region4: #{tpu_custom_call.1} parent=0 // pred_region
    _
  $region5: #{tpu_custom_call.1} parent=0 // pred_fallthru
    _
  // Predicated region
  $region6: #{tpu_custom_call.1} parent=0 // pred_check
    _
  $region7: #{tpu_custom_call.1} parent=0 // pred_check_branch
    %18 = sbr.rel (0) target = $region9
  $region8: #{tpu_custom_call.1} parent=0 // pred_region
    _
  $region9: #{tpu_custom_call.1} parent=0 // pred_fallthru
    _
  // Predicated region
  $region10: #{tpu_custom_call.1} parent=0 // pred_check
    _
  $region11: #{tpu_custom_call.1} parent=0 // pred_check_branch
    %20 = sbr.rel (0) target = $region13
  $region12: #{tpu_custom_call.1} parent=0 // pred_region
    _
  $region13: #{tpu_custom_call.1} parent=0 // pred_fallthru
    _
  // Predicated region
  $region14: #{tpu_custom_call.1} parent=0 // pred_check
    _
  $region15: #{tpu_custom_call.1} parent=0 // pred_check_branch
    %22 = sbr.rel (0) target = $region17
  $region16: #{tpu_custom_call.1} parent=0 // pred_region
    _
  $region17: #{tpu_custom_call.1} parent=0 // pred_fallthru
    _
  // Predicated region
  $region18: #{tpu_custom_call.1} parent=0 // pred_check
    _
  $region19: #{tpu_custom_call.1} parent=0 // pred_check_branch
    %24 = sbr.rel (0) target = $region21
  $region20: #{tpu_custom_call.1} parent=0 // pred_region
    _
  $region21: #{tpu_custom_call.1} parent=0 // pred_fallthru
    _
  // Predicated region
  $region22: #{tpu_custom_call.1} parent=0 // pred_check
    _
  $region23: #{tpu_custom_call.1} parent=0 // pred_check_branch
    %26 = sbr.rel (0) target = $region25
  $region24: #{tpu_custom_call.1} parent=0 // pred_region
    _
  $region25: #{tpu_custom_call.1} parent=0 // pred_fallthru
    _
  // Predicated region
  $region26: #{tpu_custom_call.1} parent=0 // pred_check
    _
  $region27: #{tpu_custom_call.1} parent=0 // pred_check_branch
    %28 = sbr.rel (0) target = $region29
  $region28: #{tpu_custom_call.1} parent=0 // pred_region
    _
  $region29: #{tpu_custom_call.1} parent=0 // pred_fallthru
    _
  // Predicated region
  $region30: #{tpu_custom_call.1} parent=0 // pred_check
    _
  $region31: #{tpu_custom_call.1} parent=0 // pred_check_branch
    %30 = sbr.rel (0) target = $region33
  $region32: #{tpu_custom_call.1} parent=0 // pred_region
    _
  $region33: #{tpu_custom_call.1} parent=0 // pred_fallthru
    _
  // Predicated region
  $region34: #{tpu_custom_call.1} parent=0 // pred_check
    _
  $region35: #{tpu_custom_call.1} parent=0 // pred_check_branch
    %32 = sbr.rel (0) target = $region37
  $region36: #{tpu_custom_call.1} parent=0 // pred_region
    _
  $region37: #{tpu_custom_call.1} parent=0 // pred_fallthru
    _
  %p33 = scmp.eq.s32.totalorder 0, 0
  // Predicated region
  $region38: #{tpu_custom_call.1} parent=0 // pred_check
    %p34 = pneg %p33
  $region39: #{tpu_custom_call.1} parent=0 // pred_check_branch
    %36 = sbr.rel (%p34) target = $region41
  $region40: #{tpu_custom_call.1} parent=0 // pred_region
    %v37 = vld [vmem:[%s0] sm:$0xff]
    %v38 = vld [vmem:[%s0 + $0x8] sm:$0xff]
    %v39 = vld [vmem:[%s0 + $0x10] sm:$0xff]
    %v40 = vld [vmem:[%s0 + $0x18] sm:$0xff]
    %v41 = vld [vmem:[%s0 + $0x20] sm:$0xff]
    %v42 = vld [vmem:[%s0 + $0x28] sm:$0xff]
    %v43 = vld [vmem:[%s0 + $0x30] sm:$0xff]
    %v44 = vld [vmem:[%s0 + $0x38] sm:$0xff]
    %v45 = vld [vmem:[%s0 + $0x40] sm:$0xff]
    %v46 = vld [vmem:[%s0 + $0x48] sm:$0xff]
    %v47 = vld [vmem:[%s0 + $0x50] sm:$0xff]
    %v48 = vld [vmem:[%s0 + $0x58] sm:$0xff]
    %v49 = vld [vmem:[%s0 + $0x60] sm:$0xff]
    %v50 = vld [vmem:[%s0 + $0x68] sm:$0xff]
    %v51 = vld [vmem:[%s0 + $0x70] sm:$0xff]
    %v52 = vld [vmem:[%s0 + $0x78] sm:$0xff]
    %v53 = vld [vmem:[%s2] sm:$0xff]
    %v54 = vld [vmem:[%s2 + $0x8] sm:$0xff]
    %v55 = vld [vmem:[%s3] sm:$0x1]
    %v57 = vlaneseq
    %v58 = vshrl.u32 %v57, 7
    %v59 = vsub.s32 0, %v58
    %v60 = vrot.slane %v55, %v59
    %vm62 = vcmask 130048
    %v64 = vsel %vm62, %v37, 0
    %v67 = vsel %vm62, %v38, 0
    %v70 = vsel %vm62, %v39, 0
    %v73 = vsel %vm62, %v40, 0
    %v76 = vsel %vm62, %v41, 0
    %v79 = vsel %vm62, %v42, 0
    %v82 = vsel %vm62, %v43, 0
    %v85 = vsel %vm62, %v44, 0
    %v88 = vsel %vm62, %v45, 0
    %v91 = vsel %vm62, %v46, 0
    %v94 = vsel %vm62, %v47, 0
    %v97 = vsel %vm62, %v48, 0
    %v100 = vsel %vm62, %v49, 0
    %v103 = vsel %vm62, %v50, 0
    %v106 = vsel %vm62, %v51, 0
    %v109 = vsel %vm62, %v52, 0
    %111 = vmatprep.subr.mxu0 0.0
    %112 = vmatpush1.msra.mxu0 0.0
    %113 = vmatprep.subr.mxu0 0.0
    %114 = vmatpush1.msra.mxu0 0.0
    %115 = vmatprep.subr.mxu0 0.0
    %116 = vmatpush1.msra.mxu0 0.0
    %117 = vmatprep.subr.mxu0 0.0
    %118 = vmatpush1.msra.mxu0 0.0
    %119 = vmatprep.subr.mxu0 0.0
    %120 = vmatpush1.msra.mxu0 0.0
    %121 = vmatprep.subr.mxu0 0.0
    %122 = vmatpush1.msra.mxu0 0.0
    %123 = vmatprep.subr.mxu0 0.0
    %124 = vmatpush1.msra.mxu0 0.0
    %125 = vmatprep.subr.mxu0 0.0
    %126 = vmatpush1.msra.mxu0 0.0
    %127 = vmatprep.subr.mxu0 0.0
    %128 = vmatpush1.msra.mxu0 0.0
    %129 = vmatprep.subr.mxu0 0.0
    %130 = vmatpush1.msra.mxu0 0.0
    %131 = vmatprep.subr.mxu0 0.0
    %132 = vmatpush1.msra.mxu0 0.0
    %133 = vmatprep.subr.mxu0 0.0
    %134 = vmatpush1.msra.mxu0 0.0
    %135 = vmatprep.subr.mxu0 0.0
    %136 = vmatpush1.msra.mxu0 0.0
    %137 = vmatprep.subr.mxu0 0.0
    %138 = vmatpush1.msra.mxu0 0.0
    %139 = vmatprep.subr.mxu0 0.0
    %140 = vmatpush1.msra.mxu0 %v54
    %141 = vmatprep.subr.mxu0 0.0
    %142 = vmatpush1.msra.mxu0 %v53
    %143 = vmatprep.subr.mxu0 0.0
    %144 = vmatpush2.msra.mxu0 0.0
    %145 = vmatprep.subr.mxu0 0.0
    %146 = vmatpush2.msra.mxu0 0.0
    %147 = vmatprep.subr.mxu0 0.0
    %148 = vmatpush2.msra.mxu0 0.0
    %149 = vmatprep.subr.mxu0 0.0
    %150 = vmatpush2.msra.mxu0 0.0
    %151 = vmatprep.subr.mxu0 0.0
    %152 = vmatpush2.msra.mxu0 0.0
    %153 = vmatprep.subr.mxu0 0.0
    %154 = vmatpush2.msra.mxu0 0.0
    %155 = vmatprep.subr.mxu0 0.0
    %156 = vmatpush2.msra.mxu0 0.0
    %157 = vmatprep.subr.mxu0 0.0
    %158 = vmatpush2.msra.mxu0 0.0
    %159 = vmatprep.subr.mxu0 0.0
    %160 = vmatpush2.msra.mxu0 0.0
    %161 = vmatprep.subr.mxu0 0.0
    %162 = vmatpush2.msra.mxu0 0.0
    %163 = vmatprep.subr.mxu0 0.0
    %164 = vmatpush2.msra.mxu0 0.0
    %165 = vmatprep.subr.mxu0 0.0
    %166 = vmatpush2.msra.mxu0 0.0
    %167 = vmatprep.subr.mxu0 0.0
    %168 = vmatpush2.msra.mxu0 0.0
    %169 = vmatprep.subr.mxu0 0.0
    %170 = vmatpush2.msra.mxu0 0.0
    %171 = vmatprep.subr.mxu0 0.0
    %172 = vmatpush2.msra.mxu0 0.0
    %173 = vmatprep.subr.mxu0 0.0
    %174 = vmatpush2.msra.mxu0 0.0
    %175 = vmatprep.mubr.f32.mxu0 0.0
    %176 = vmatmul.mubr.f32.gmra.mxu0 %v64
    %v177 = vpop.f32.mrf.mxu0
    %v178 = vadd.f32 %v60, %v177
    %v179 = vpop.f32.mrf.mxu0
    %180 = vmatprep.mubr.f32.mxu0 0.0
    %181 = vmatmul.mubr.f32.gmra.mxu0 %v67
    %v182 = vpop.f32.mrf.mxu0
    %v183 = vadd.f32 %v60, %v182
    %v184 = vpop.f32.mrf.mxu0
    %185 = vmatprep.mubr.f32.mxu0 0.0
    %186 = vmatmul.mubr.f32.gmra.mxu0 %v70
    %v187 = vpop.f32.mrf.mxu0
    %v188 = vadd.f32 %v60, %v187
    %v189 = vpop.f32.mrf.mxu0
    %190 = vmatprep.mubr.f32.mxu0 0.0
    %191 = vmatmul.mubr.f32.gmra.mxu0 %v73
    %v192 = vpop.f32.mrf.mxu0
    %v193 = vadd.f32 %v60, %v192
    %v194 = vpop.f32.mrf.mxu0
    %195 = vmatprep.mubr.f32.mxu0 0.0
    %196 = vmatmul.mubr.f32.gmra.mxu0 %v76
    %v197 = vpop.f32.mrf.mxu0
    %v198 = vadd.f32 %v60, %v197
    %v199 = vpop.f32.mrf.mxu0
    %200 = vmatprep.mubr.f32.mxu0 0.0
    %201 = vmatmul.mubr.f32.gmra.mxu0 %v79
    %v202 = vpop.f32.mrf.mxu0
    %v203 = vadd.f32 %v60, %v202
    %v204 = vpop.f32.mrf.mxu0
    %205 = vmatprep.mubr.f32.mxu0 0.0
    %206 = vmatmul.mubr.f32.gmra.mxu0 %v82
    %v207 = vpop.f32.mrf.mxu0
    %v208 = vadd.f32 %v60, %v207
    %v209 = vpop.f32.mrf.mxu0
    %210 = vmatprep.mubr.f32.mxu0 0.0
    %211 = vmatmul.mubr.f32.gmra.mxu0 %v85
    %v212 = vpop.f32.mrf.mxu0
    %v213 = vadd.f32 %v60, %v212
    %v214 = vpop.f32.mrf.mxu0
    %215 = vmatprep.mubr.f32.mxu0 0.0
    %216 = vmatmul.mubr.f32.gmra.mxu0 %v88
    %v217 = vpop.f32.mrf.mxu0
    %v218 = vadd.f32 %v60, %v217
    %v219 = vpop.f32.mrf.mxu0
    %220 = vmatprep.mubr.f32.mxu0 0.0
    %221 = vmatmul.mubr.f32.gmra.mxu0 %v91
    %v222 = vpop.f32.mrf.mxu0
    %v223 = vadd.f32 %v60, %v222
    %v224 = vpop.f32.mrf.mxu0
    %225 = vmatprep.mubr.f32.mxu0 0.0
    %226 = vmatmul.mubr.f32.gmra.mxu0 %v94
    %v227 = vpop.f32.mrf.mxu0
    %v228 = vadd.f32 %v60, %v227
    %v229 = vpop.f32.mrf.mxu0
    %230 = vmatprep.mubr.f32.mxu0 0.0
    %231 = vmatmul.mubr.f32.gmra.mxu0 %v97
    %v232 = vpop.f32.mrf.mxu0
    %v233 = vadd.f32 %v60, %v232
    %v234 = vpop.f32.mrf.mxu0
    %235 = vmatprep.mubr.f32.mxu0 0.0
    %236 = vmatmul.mubr.f32.gmra.mxu0 %v100
    %v237 = vpop.f32.mrf.mxu0
    %v238 = vadd.f32 %v60, %v237
    %v239 = vpop.f32.mrf.mxu0
    %240 = vmatprep.mubr.f32.mxu0 0.0
    %241 = vmatmul.mubr.f32.gmra.mxu0 %v103
    %v242 = vpop.f32.mrf.mxu0
    %v243 = vadd.f32 %v60, %v242
    %v244 = vpop.f32.mrf.mxu0
    %245 = vmatprep.mubr.f32.mxu0 0.0
    %246 = vmatmul.mubr.f32.gmra.mxu0 %v106
    %v247 = vpop.f32.mrf.mxu0
    %v248 = vadd.f32 %v60, %v247
    %v249 = vpop.f32.mrf.mxu0
    %250 = vmatprep.mubr.f32.mxu0 0.0
    %251 = vmatmul.mubr.f32.gmra.mxu0 %v109
    %v252 = vpop.f32.mrf.mxu0
    %v253 = vadd.f32 %v60, %v252
    %v254 = vpop.f32.mrf.mxu0
    %255 = vdwg.mxu0
    %v256 = vmul.f32 %v178, 0.70710677
    %v257 = vmul.f32 %v183, 0.70710677
    %v258 = vmul.f32 %v188, 0.70710677
    %v259 = vmul.f32 %v193, 0.70710677
    %v260 = vmul.f32 %v198, 0.70710677
    %v261 = vmul.f32 %v203, 0.70710677
    %v262 = vmul.f32 %v208, 0.70710677
    %v263 = vmul.f32 %v213, 0.70710677
    %v264 = vmul.f32 %v218, 0.70710677
    %v265 = vmul.f32 %v223, 0.70710677
    %v266 = vmul.f32 %v228, 0.70710677
    %v267 = vmul.f32 %v233, 0.70710677
    %v268 = vmul.f32 %v238, 0.70710677
    %v269 = vmul.f32 %v243, 0.70710677
    %v270 = vmul.f32 %v248, 0.70710677
    %v271 = vmul.f32 %v253, 0.70710677
    %vm272 = vcmask 15360
    %273 = vst.msk [vmem:[#allocation2] sm:$0xff] %vm272, %v256
    %274 = vst.msk [vmem:[#allocation2 + $0x8] sm:$0xff] %vm272, %v257
    %275 = vst.msk [vmem:[#allocation2 + $0x10] sm:$0xff] %vm272, %v258
    %276 = vst.msk [vmem:[#allocation2 + $0x18] sm:$0xff] %vm272, %v259
    %277 = vst.msk [vmem:[#allocation2 + $0x20] sm:$0xff] %vm272, %v260
    %278 = vst.msk [vmem:[#allocation2 + $0x28] sm:$0xff] %vm272, %v261
    %279 = vst.msk [vmem:[#allocation2 + $0x30] sm:$0xff] %vm272, %v262
    %280 = vst.msk [vmem:[#allocation2 + $0x38] sm:$0xff] %vm272, %v263
    %281 = vst.msk [vmem:[#allocation2 + $0x40] sm:$0xff] %vm272, %v264
    %282 = vst.msk [vmem:[#allocation2 + $0x48] sm:$0xff] %vm272, %v265
    %283 = vst.msk [vmem:[#allocation2 + $0x50] sm:$0xff] %vm272, %v266
    %284 = vst.msk [vmem:[#allocation2 + $0x58] sm:$0xff] %vm272, %v267
    %285 = vst.msk [vmem:[#allocation2 + $0x60] sm:$0xff] %vm272, %v268
    %286 = vst.msk [vmem:[#allocation2 + $0x68] sm:$0xff] %vm272, %v269
    %287 = vst.msk [vmem:[#allocation2 + $0x70] sm:$0xff] %vm272, %v270
    %288 = vst.msk [vmem:[#allocation2 + $0x78] sm:$0xff] %vm272, %v271
    %vm289 = vcmask 7168
    %290 = vst.msk [vmem:[#allocation3] sm:$0xff] %vm289, -inf
    %291 = vst.msk [vmem:[#allocation3 + $0x8] sm:$0xff] %vm289, -inf
    %292 = vst.msk [vmem:[#allocation3 + $0x10] sm:$0xff] %vm289, -inf
    %293 = vst.msk [vmem:[#allocation3 + $0x18] sm:$0xff] %vm289, -inf
    %294 = vst.msk [vmem:[#allocation3 + $0x20] sm:$0xff] %vm289, -inf
    %295 = vst.msk [vmem:[#allocation3 + $0x28] sm:$0xff] %vm289, -inf
    %296 = vst.msk [vmem:[#allocation3 + $0x30] sm:$0xff] %vm289, -inf
    %297 = vst.msk [vmem:[#allocation3 + $0x38] sm:$0xff] %vm289, -inf
    %298 = vst.msk [vmem:[#allocation3 + $0x40] sm:$0xff] %vm289, -inf
    %299 = vst.msk [vmem:[#allocation3 + $0x48] sm:$0xff] %vm289, -inf
    %300 = vst.msk [vmem:[#allocation3 + $0x50] sm:$0xff] %vm289, -inf
    %301 = vst.msk [vmem:[#allocation3 + $0x58] sm:$0xff] %vm289, -inf
    %302 = vst.msk [vmem:[#allocation3 + $0x60] sm:$0xff] %vm289, -inf
    %303 = vst.msk [vmem:[#allocation3 + $0x68] sm:$0xff] %vm289, -inf
    %304 = vst.msk [vmem:[#allocation3 + $0x70] sm:$0xff] %vm289, -inf
    %305 = vst.msk [vmem:[#allocation3 + $0x78] sm:$0xff] %vm289, -inf
    %306 = vst.msk [vmem:[#allocation4] sm:$0xff] %vm289, 0.0
    %307 = vst.msk [vmem:[#allocation4 + $0x8] sm:$0xff] %vm289, 0.0
    %308 = vst.msk [vmem:[#allocation4 + $0x10] sm:$0xff] %vm289, 0.0
    %309 = vst.msk [vmem:[#allocation4 + $0x18] sm:$0xff] %vm289, 0.0
    %310 = vst.msk [vmem:[#allocation4 + $0x20] sm:$0xff] %vm289, 0.0
    %311 = vst.msk [vmem:[#allocation4 + $0x28] sm:$0xff] %vm289, 0.0
    %312 = vst.msk [vmem:[#allocation4 + $0x30] sm:$0xff] %vm289, 0.0
    %313 = vst.msk [vmem:[#allocation4 + $0x38] sm:$0xff] %vm289, 0.0
    %314 = vst.msk [vmem:[#allocation4 + $0x40] sm:$0xff] %vm289, 0.0
    %315 = vst.msk [vmem:[#allocation4 + $0x48] sm:$0xff] %vm289, 0.0
    %316 = vst.msk [vmem:[#allocation4 + $0x50] sm:$0xff] %vm289, 0.0
    %317 = vst.msk [vmem:[#allocation4 + $0x58] sm:$0xff] %vm289, 0.0
    %318 = vst.msk [vmem:[#allocation4 + $0x60] sm:$0xff] %vm289, 0.0
    %319 = vst.msk [vmem:[#allocation4 + $0x68] sm:$0xff] %vm289, 0.0
    %320 = vst.msk [vmem:[#allocation4 + $0x70] sm:$0xff] %vm289, 0.0
    %321 = vst.msk [vmem:[#allocation4 + $0x78] sm:$0xff] %vm289, 0.0
    %322 = vst.msk [vmem:[#allocation5] sm:$0xff] %vm62, 0.0
    %323 = vst.msk [vmem:[#allocation5 + $0x8] sm:$0xff] %vm62, 0.0
    %324 = vst.msk [vmem:[#allocation5 + $0x10] sm:$0xff] %vm62, 0.0
    %325 = vst.msk [vmem:[#allocation5 + $0x18] sm:$0xff] %vm62, 0.0
    %326 = vst.msk [vmem:[#allocation5 + $0x20] sm:$0xff] %vm62, 0.0
    %327 = vst.msk [vmem:[#allocation5 + $0x28] sm:$0xff] %vm62, 0.0
    %328 = vst.msk [vmem:[#allocation5 + $0x30] sm:$0xff] %vm62, 0.0
    %329 = vst.msk [vmem:[#allocation5 + $0x38] sm:$0xff] %vm62, 0.0
    %330 = vst.msk [vmem:[#allocation5 + $0x40] sm:$0xff] %vm62, 0.0
    %331 = vst.msk [vmem:[#allocation5 + $0x48] sm:$0xff] %vm62, 0.0
    %332 = vst.msk [vmem:[#allocation5 + $0x50] sm:$0xff] %vm62, 0.0
    %333 = vst.msk [vmem:[#allocation5 + $0x58] sm:$0xff] %vm62, 0.0
    %334 = vst.msk [vmem:[#allocation5 + $0x60] sm:$0xff] %vm62, 0.0
    %335 = vst.msk [vmem:[#allocation5 + $0x68] sm:$0xff] %vm62, 0.0
    %336 = vst.msk [vmem:[#allocation5 + $0x70] sm:$0xff] %vm62, 0.0
    %337 = vst.msk [vmem:[#allocation5 + $0x78] sm:$0xff] %vm62, 0.0
  $region41: #{tpu_custom_call.1} parent=0 // pred_fallthru
    _
  %v338 = vld [vmem:[%s1] sm:$0xff]
  %v339 = vld [vmem:[%s1 + $0x8] sm:$0xff]
  %v340 = vld [vmem:[%s1 + $0x10] sm:$0xff]
  %v341 = vld [vmem:[%s1 + $0x18] sm:$0xff]
  %v342 = vld [vmem:[%s1 + $0x20] sm:$0xff]
  %v343 = vld [vmem:[%s1 + $0x28] sm:$0xff]
  %v344 = vld [vmem:[%s1 + $0x30] sm:$0xff]
  %v345 = vld [vmem:[%s1 + $0x38] sm:$0xff]
  %v346 = vld [vmem:[%s1 + $0x40] sm:$0xff]
  %v347 = vld [vmem:[%s1 + $0x48] sm:$0xff]
  %v348 = vld [vmem:[%s1 + $0x50] sm:$0xff]
  %v349 = vld [vmem:[%s1 + $0x58] sm:$0xff]
  %v350 = vld [vmem:[%s1 + $0x60] sm:$0xff]
  %v351 = vld [vmem:[%s1 + $0x68] sm:$0xff]
  %v352 = vld [vmem:[%s1 + $0x70] sm:$0xff]
  %v353 = vld [vmem:[%s1 + $0x78] sm:$0xff]
  %v354 = vld [vmem:[%s4] sm:$0xff]
  %v355 = vld [vmem:[%s4 + $0x8] sm:$0xff]
  %v356 = vld [vmem:[%s5] sm:$0x1]
  %v358 = vlaneseq
  %v359 = vshrl.u32 %v358, 7
  %v360 = vsub.s32 0, %v359
  %v361 = vrot.slane %v356, %v360
  %vm363 = vcmask 130048
  %v365 = vsel %vm363, %v338, 0
  %v368 = vsel %vm363, %v339, 0
  %v371 = vsel %vm363, %v340, 0
  %v374 = vsel %vm363, %v341, 0
  %v377 = vsel %vm363, %v342, 0
  %v380 = vsel %vm363, %v343, 0
  %v383 = vsel %vm363, %v344, 0
  %v386 = vsel %vm363, %v345, 0
  %v389 = vsel %vm363, %v346, 0
  %v392 = vsel %vm363, %v347, 0
  %v395 = vsel %vm363, %v348, 0
  %v398 = vsel %vm363, %v349, 0
  %v401 = vsel %vm363, %v350, 0
  %v404 = vsel %vm363, %v351, 0
  %v407 = vsel %vm363, %v352, 0
  %v410 = vsel %vm363, %v353, 0
  %412 = vmatprep.subr.mxu0 0.0
  %413 = vmatpush1.msra.mxu0 0.0
  %414 = vmatprep.subr.mxu0 0.0
  %415 = vmatpush1.msra.mxu0 0.0
  %416 = vmatprep.subr.mxu0 0.0
  %417 = vmatpush1.msra.mxu0 0.0
  %418 = vmatprep.subr.mxu0 0.0
  %419 = vmatpush1.msra.mxu0 0.0
  %420 = vmatprep.subr.mxu0 0.0
  %421 = vmatpush1.msra.mxu0 0.0
  %422 = vmatprep.subr.mxu0 0.0
  %423 = vmatpush1.msra.mxu0 0.0
  %424 = vmatprep.subr.mxu0 0.0
  %425 = vmatpush1.msra.mxu0 0.0
  %426 = vmatprep.subr.mxu0 0.0
  %427 = vmatpush1.msra.mxu0 0.0
  %428 = vmatprep.subr.mxu0 0.0
  %429 = vmatpush1.msra.mxu0 0.0
  %430 = vmatprep.subr.mxu0 0.0
  %431 = vmatpush1.msra.mxu0 0.0
  %432 = vmatprep.subr.mxu0 0.0
  %433 = vmatpush1.msra.mxu0 0.0
  %434 = vmatprep.subr.mxu0 0.0
  %435 = vmatpush1.msra.mxu0 0.0
  %436 = vmatprep.subr.mxu0 0.0
  %437 = vmatpush1.msra.mxu0 0.0
  %438 = vmatprep.subr.mxu0 0.0
  %439 = vmatpush1.msra.mxu0 0.0
  %440 = vmatprep.subr.mxu0 0.0
  %441 = vmatpush1.msra.mxu0 %v355
  %442 = vmatprep.subr.mxu0 0.0
  %443 = vmatpush1.msra.mxu0 %v354
  %444 = vmatprep.subr.mxu0 0.0
  %445 = vmatpush2.msra.mxu0 0.0
  %446 = vmatprep.subr.mxu0 0.0
  %447 = vmatpush2.msra.mxu0 0.0
  %448 = vmatprep.subr.mxu0 0.0
  %449 = vmatpush2.msra.mxu0 0.0
  %450 = vmatprep.subr.mxu0 0.0
  %451 = vmatpush2.msra.mxu0 0.0
  %452 = vmatprep.subr.mxu0 0.0
  %453 = vmatpush2.msra.mxu0 0.0
  %454 = vmatprep.subr.mxu0 0.0
  %455 = vmatpush2.msra.mxu0 0.0
  %456 = vmatprep.subr.mxu0 0.0
  %457 = vmatpush2.msra.mxu0 0.0
  %458 = vmatprep.subr.mxu0 0.0
  %459 = vmatpush2.msra.mxu0 0.0
  %460 = vmatprep.subr.mxu0 0.0
  %461 = vmatpush2.msra.mxu0 0.0
  %462 = vmatprep.subr.mxu0 0.0
  %463 = vmatpush2.msra.mxu0 0.0
  %464 = vmatprep.subr.mxu0 0.0
  %465 = vmatpush2.msra.mxu0 0.0
  %466 = vmatprep.subr.mxu0 0.0
  %467 = vmatpush2.msra.mxu0 0.0
  %468 = vmatprep.subr.mxu0 0.0
  %469 = vmatpush2.msra.mxu0 0.0
  %470 = vmatprep.subr.mxu0 0.0
  %471 = vmatpush2.msra.mxu0 0.0
  %472 = vmatprep.subr.mxu0 0.0
  %473 = vmatpush2.msra.mxu0 0.0
  %474 = vmatprep.subr.mxu0 0.0
  %475 = vmatpush2.msra.mxu0 0.0
  %476 = vmatprep.mubr.f32.mxu0 0.0
  %477 = vmatmul.mubr.f32.gmra.mxu0 %v365
  %v478 = vpop.f32.mrf.mxu0
  %v479 = vadd.f32 %v361, %v478
  %v480 = vpop.f32.mrf.mxu0
  %481 = vmatprep.mubr.f32.mxu0 0.0
  %482 = vmatmul.mubr.f32.gmra.mxu0 %v368
  %v483 = vpop.f32.mrf.mxu0
  %v484 = vadd.f32 %v361, %v483
  %v485 = vpop.f32.mrf.mxu0
  %486 = vmatprep.mubr.f32.mxu0 0.0
  %487 = vmatmul.mubr.f32.gmra.mxu0 %v371
  %v488 = vpop.f32.mrf.mxu0
  %v489 = vadd.f32 %v361, %v488
  %v490 = vpop.f32.mrf.mxu0
  %491 = vmatprep.mubr.f32.mxu0 0.0
  %492 = vmatmul.mubr.f32.gmra.mxu0 %v374
  %v493 = vpop.f32.mrf.mxu0
  %v494 = vadd.f32 %v361, %v493
  %v495 = vpop.f32.mrf.mxu0
  %496 = vmatprep.mubr.f32.mxu0 0.0
  %497 = vmatmul.mubr.f32.gmra.mxu0 %v377
  %v498 = vpop.f32.mrf.mxu0
  %v499 = vadd.f32 %v361, %v498
  %v500 = vpop.f32.mrf.mxu0
  %501 = vmatprep.mubr.f32.mxu0 0.0
  %502 = vmatmul.mubr.f32.gmra.mxu0 %v380
  %v503 = vpop.f32.mrf.mxu0
  %v504 = vadd.f32 %v361, %v503
  %v505 = vpop.f32.mrf.mxu0
  %506 = vmatprep.mubr.f32.mxu0 0.0
  %507 = vmatmul.mubr.f32.gmra.mxu0 %v383
  %v508 = vpop.f32.mrf.mxu0
  %v509 = vadd.f32 %v361, %v508
  %v510 = vpop.f32.mrf.mxu0
  %511 = vmatprep.mubr.f32.mxu0 0.0
  %512 = vmatmul.mubr.f32.gmra.mxu0 %v386
  %v513 = vpop.f32.mrf.mxu0
  %v514 = vadd.f32 %v361, %v513
  %v515 = vpop.f32.mrf.mxu0
  %516 = vmatprep.mubr.f32.mxu0 0.0
  %517 = vmatmul.mubr.f32.gmra.mxu0 %v389
  %v518 = vpop.f32.mrf.mxu0
  %v519 = vadd.f32 %v361, %v518
  %v520 = vpop.f32.mrf.mxu0
  %521 = vmatprep.mubr.f32.mxu0 0.0
  %522 = vmatmul.mubr.f32.gmra.mxu0 %v392
  %v523 = vpop.f32.mrf.mxu0
  %v524 = vadd.f32 %v361, %v523
  %v525 = vpop.f32.mrf.mxu0
  %526 = vmatprep.mubr.f32.mxu0 0.0
  %527 = vmatmul.mubr.f32.gmra.mxu0 %v395
  %v528 = vpop.f32.mrf.mxu0
  %v529 = vadd.f32 %v361, %v528
  %v530 = vpop.f32.mrf.mxu0
  %531 = vmatprep.mubr.f32.mxu0 0.0
  %532 = vmatmul.mubr.f32.gmra.mxu0 %v398
  %v533 = vpop.f32.mrf.mxu0
  %v534 = vadd.f32 %v361, %v533
  %v535 = vpop.f32.mrf.mxu0
  %536 = vmatprep.mubr.f32.mxu0 0.0
  %537 = vmatmul.mubr.f32.gmra.mxu0 %v401
  %v538 = vpop.f32.mrf.mxu0
  %v539 = vadd.f32 %v361, %v538
  %v540 = vpop.f32.mrf.mxu0
  %541 = vmatprep.mubr.f32.mxu0 0.0
  %542 = vmatmul.mubr.f32.gmra.mxu0 %v404
  %v543 = vpop.f32.mrf.mxu0
  %v544 = vadd.f32 %v361, %v543
  %v545 = vpop.f32.mrf.mxu0
  %546 = vmatprep.mubr.f32.mxu0 0.0
  %547 = vmatmul.mubr.f32.gmra.mxu0 %v407
  %v548 = vpop.f32.mrf.mxu0
  %v549 = vadd.f32 %v361, %v548
  %v550 = vpop.f32.mrf.mxu0
  %551 = vmatprep.mubr.f32.mxu0 0.0
  %552 = vmatmul.mubr.f32.gmra.mxu0 %v410
  %v553 = vpop.f32.mrf.mxu0
  %v554 = vadd.f32 %v361, %v553
  %v555 = vpop.f32.mrf.mxu0
  %556 = vdwg.mxu0
  %v557 = vld [vmem:[%s6] sm:$0xff]
  %v558 = vld [vmem:[%s6 + $0x8] sm:$0xff]
  %v559 = vld [vmem:[%s7] sm:$0x1]
  %v561 = vlaneseq
  %v562 = vshrl.u32 %v561, 7
  %v563 = vsub.s32 0, %v562
  %v564 = vrot.slane %v559, %v563
  %566 = vmatprep.subr.mxu0 0.0
  %567 = vmatpush1.msra.mxu0 0.0
  %568 = vmatprep.subr.mxu0 0.0
  %569 = vmatpush1.msra.mxu0 0.0
  %570 = vmatprep.subr.mxu0 0.0
  %571 = vmatpush1.msra.mxu0 0.0
  %572 = vmatprep.subr.mxu0 0.0
  %573 = vmatpush1.msra.mxu0 0.0
  %574 = vmatprep.subr.mxu0 0.0
  %575 = vmatpush1.msra.mxu0 0.0
  %576 = vmatprep.subr.mxu0 0.0
  %577 = vmatpush1.msra.mxu0 0.0
  %578 = vmatprep.subr.mxu0 0.0
  %579 = vmatpush1.msra.mxu0 0.0
  %580 = vmatprep.subr.mxu0 0.0
  %581 = vmatpush1.msra.mxu0 0.0
  %582 = vmatprep.subr.mxu0 0.0
  %583 = vmatpush1.msra.mxu0 0.0
  %584 = vmatprep.subr.mxu0 0.0
  %585 = vmatpush1.msra.mxu0 0.0
  %586 = vmatprep.subr.mxu0 0.0
  %587 = vmatpush1.msra.mxu0 0.0
  %588 = vmatprep.subr.mxu0 0.0
  %589 = vmatpush1.msra.mxu0 0.0
  %590 = vmatprep.subr.mxu0 0.0
  %591 = vmatpush1.msra.mxu0 0.0
  %592 = vmatprep.subr.mxu0 0.0
  %593 = vmatpush1.msra.mxu0 0.0
  %594 = vmatprep.subr.mxu0 0.0
  %595 = vmatpush1.msra.mxu0 %v558
  %596 = vmatprep.subr.mxu0 0.0
  %597 = vmatpush1.msra.mxu0 %v557
  %598 = vmatprep.subr.mxu0 0.0
  %599 = vmatpush2.msra.mxu0 0.0
  %600 = vmatprep.subr.mxu0 0.0
  %601 = vmatpush2.msra.mxu0 0.0
  %602 = vmatprep.subr.mxu0 0.0
  %603 = vmatpush2.msra.mxu0 0.0
  %604 = vmatprep.subr.mxu0 0.0
  %605 = vmatpush2.msra.mxu0 0.0
  %606 = vmatprep.subr.mxu0 0.0
  %607 = vmatpush2.msra.mxu0 0.0
  %608 = vmatprep.subr.mxu0 0.0
  %609 = vmatpush2.msra.mxu0 0.0
  %610 = vmatprep.subr.mxu0 0.0
  %611 = vmatpush2.msra.mxu0 0.0
  %612 = vmatprep.subr.mxu0 0.0
  %613 = vmatpush2.msra.mxu0 0.0
  %614 = vmatprep.subr.mxu0 0.0
  %615 = vmatpush2.msra.mxu0 0.0
  %616 = vmatprep.subr.mxu0 0.0
  %617 = vmatpush2.msra.mxu0 0.0
  %618 = vmatprep.subr.mxu0 0.0
  %619 = vmatpush2.msra.mxu0 0.0
  %620 = vmatprep.subr.mxu0 0.0
  %621 = vmatpush2.msra.mxu0 0.0
  %622 = vmatprep.subr.mxu0 0.0
  %623 = vmatpush2.msra.mxu0 0.0
  %624 = vmatprep.subr.mxu0 0.0
  %625 = vmatpush2.msra.mxu0 0.0
  %626 = vmatprep.subr.mxu0 0.0
  %627 = vmatpush2.msra.mxu0 0.0
  %628 = vmatprep.subr.mxu0 0.0
  %629 = vmatpush2.msra.mxu0 0.0
  %630 = vmatprep.mubr.f32.mxu0 0.0
  %631 = vmatmul.mubr.f32.gmra.mxu0 %v365
  %v632 = vpop.f32.mrf.mxu0
  %v633 = vadd.f32 %v564, %v632
  %v634 = vpop.f32.mrf.mxu0
  %635 = vmatprep.mubr.f32.mxu0 0.0
  %636 = vmatmul.mubr.f32.gmra.mxu0 %v368
  %v637 = vpop.f32.mrf.mxu0
  %v638 = vadd.f32 %v564, %v637
  %v639 = vpop.f32.mrf.mxu0
  %640 = vmatprep.mubr.f32.mxu0 0.0
  %641 = vmatmul.mubr.f32.gmra.mxu0 %v371
  %v642 = vpop.f32.mrf.mxu0
  %v643 = vadd.f32 %v564, %v642
  %v644 = vpop.f32.mrf.mxu0
  %645 = vmatprep.mubr.f32.mxu0 0.0
  %646 = vmatmul.mubr.f32.gmra.mxu0 %v374
  %v647 = vpop.f32.mrf.mxu0
  %v648 = vadd.f32 %v564, %v647
  %v649 = vpop.f32.mrf.mxu0
  %650 = vmatprep.mubr.f32.mxu0 0.0
  %651 = vmatmul.mubr.f32.gmra.mxu0 %v377
  %v652 = vpop.f32.mrf.mxu0
  %v653 = vadd.f32 %v564, %v652
  %v654 = vpop.f32.mrf.mxu0
  %655 = vmatprep.mubr.f32.mxu0 0.0
  %656 = vmatmul.mubr.f32.gmra.mxu0 %v380
  %v657 = vpop.f32.mrf.mxu0
  %v658 = vadd.f32 %v564, %v657
  %v659 = vpop.f32.mrf.mxu0
  %660 = vmatprep.mubr.f32.mxu0 0.0
  %661 = vmatmul.mubr.f32.gmra.mxu0 %v383
  %v662 = vpop.f32.mrf.mxu0
  %v663 = vadd.f32 %v564, %v662
  %v664 = vpop.f32.mrf.mxu0
  %665 = vmatprep.mubr.f32.mxu0 0.0
  %666 = vmatmul.mubr.f32.gmra.mxu0 %v386
  %v667 = vpop.f32.mrf.mxu0
  %v668 = vadd.f32 %v564, %v667
  %v669 = vpop.f32.mrf.mxu0
  %670 = vmatprep.mubr.f32.mxu0 0.0
  %671 = vmatmul.mubr.f32.gmra.mxu0 %v389
  %v672 = vpop.f32.mrf.mxu0
  %v673 = vadd.f32 %v564, %v672
  %v674 = vpop.f32.mrf.mxu0
  %675 = vmatprep.mubr.f32.mxu0 0.0
  %676 = vmatmul.mubr.f32.gmra.mxu0 %v392
  %v677 = vpop.f32.mrf.mxu0
  %v678 = vadd.f32 %v564, %v677
  %v679 = vpop.f32.mrf.mxu0
  %680 = vmatprep.mubr.f32.mxu0 0.0
  %681 = vmatmul.mubr.f32.gmra.mxu0 %v395
  %v682 = vpop.f32.mrf.mxu0
  %v683 = vadd.f32 %v564, %v682
  %v684 = vpop.f32.mrf.mxu0
  %685 = vmatprep.mubr.f32.mxu0 0.0
  %686 = vmatmul.mubr.f32.gmra.mxu0 %v398
  %v687 = vpop.f32.mrf.mxu0
  %v688 = vadd.f32 %v564, %v687
  %v689 = vpop.f32.mrf.mxu0
  %690 = vmatprep.mubr.f32.mxu0 0.0
  %691 = vmatmul.mubr.f32.gmra.mxu0 %v401
  %v692 = vpop.f32.mrf.mxu0
  %v693 = vadd.f32 %v564, %v692
  %v694 = vpop.f32.mrf.mxu0
  %695 = vmatprep.mubr.f32.mxu0 0.0
  %696 = vmatmul.mubr.f32.gmra.mxu0 %v404
  %v697 = vpop.f32.mrf.mxu0
  %v698 = vadd.f32 %v564, %v697
  %v699 = vpop.f32.mrf.mxu0
  %700 = vmatprep.mubr.f32.mxu0 0.0
  %701 = vmatmul.mubr.f32.gmra.mxu0 %v407
  %v702 = vpop.f32.mrf.mxu0
  %v703 = vadd.f32 %v564, %v702
  %v704 = vpop.f32.mrf.mxu0
  %705 = vmatprep.mubr.f32.mxu0 0.0
  %706 = vmatmul.mubr.f32.gmra.mxu0 %v410
  %v707 = vpop.f32.mrf.mxu0
  %v708 = vadd.f32 %v564, %v707
  %v709 = vpop.f32.mrf.mxu0
  %710 = vdwg.mxu0
  %v711 = vld [vmem:[#allocation2] sm:$0xff]
  %v712 = vld [vmem:[#allocation2 + $0x8] sm:$0xff]
  %v713 = vld [vmem:[#allocation2 + $0x10] sm:$0xff]
  %v714 = vld [vmem:[#allocation2 + $0x18] sm:$0xff]
  %v715 = vld [vmem:[#allocation2 + $0x20] sm:$0xff]
  %v716 = vld [vmem:[#allocation2 + $0x28] sm:$0xff]
  %v717 = vld [vmem:[#allocation2 + $0x30] sm:$0xff]
  %v718 = vld [vmem:[#allocation2 + $0x38] sm:$0xff]
  %v719 = vld [vmem:[#allocation2 + $0x40] sm:$0xff]
  %v720 = vld [vmem:[#allocation2 + $0x48] sm:$0xff]
  %v721 = vld [vmem:[#allocation2 + $0x50] sm:$0xff]
  %v722 = vld [vmem:[#allocation2 + $0x58] sm:$0xff]
  %v723 = vld [vmem:[#allocation2 + $0x60] sm:$0xff]
  %v724 = vld [vmem:[#allocation2 + $0x68] sm:$0xff]
  %v725 = vld [vmem:[#allocation2 + $0x70] sm:$0xff]
  %v726 = vld [vmem:[#allocation2 + $0x78] sm:$0xff]
  %vm727 = vcmask 15360
  %v729 = vsel %vm727, %v711, 0
  %v732 = vsel %vm727, %v712, 0
  %v735 = vsel %vm727, %v713, 0
  %v738 = vsel %vm727, %v714, 0
  %v741 = vsel %vm727, %v715, 0
  %v744 = vsel %vm727, %v716, 0
  %v747 = vsel %vm727, %v717, 0
  %v750 = vsel %vm727, %v718, 0
  %v753 = vsel %vm727, %v479, 0
  %v756 = vsel %vm727, %v484, 0
  %v759 = vsel %vm727, %v489, 0
  %v762 = vsel %vm727, %v494, 0
  %v765 = vsel %vm727, %v499, 0
  %v768 = vsel %vm727, %v504, 0
  %v771 = vsel %vm727, %v509, 0
  %v774 = vsel %vm727, %v514, 0
  %776 = vmatprep.subr.mxu0 0.0
  %777 = vmatpush1.xpose.msra.mxu0 0.0
  %778 = vmatprep.subr.mxu0 0.0
  %779 = vmatpush1.xpose.msra.mxu0 0.0
  %780 = vmatprep.subr.mxu0 0.0
  %781 = vmatpush1.xpose.msra.mxu0 0.0
  %782 = vmatprep.subr.mxu0 0.0
  %783 = vmatpush1.xpose.msra.mxu0 0.0
  %784 = vmatprep.subr.mxu0 0.0
  %785 = vmatpush1.xpose.msra.mxu0 0.0
  %786 = vmatprep.subr.mxu0 0.0
  %787 = vmatpush1.xpose.msra.mxu0 0.0
  %788 = vmatprep.subr.mxu0 0.0
  %789 = vmatpush1.xpose.msra.mxu0 0.0
  %790 = vmatprep.subr.mxu0 0.0
  %791 = vmatpush1.xpose.msra.mxu0 0.0
  %792 = vmatprep.subr.mxu0 0.0
  %793 = vmatpush1.xpose.msra.mxu0 %v774
  %794 = vmatprep.subr.mxu0 0.0
  %795 = vmatpush1.xpose.msra.mxu0 %v771
  %796 = vmatprep.subr.mxu0 0.0
  %797 = vmatpush1.xpose.msra.mxu0 %v768
  %798 = vmatprep.subr.mxu0 0.0
  %799 = vmatpush1.xpose.msra.mxu0 %v765
  %800 = vmatprep.subr.mxu0 0.0
  %801 = vmatpush1.xpose.msra.mxu0 %v762
  %802 = vmatprep.subr.mxu0 0.0
  %803 = vmatpush1.xpose.msra.mxu0 %v759
  %804 = vmatprep.subr.mxu0 0.0
  %805 = vmatpush1.xpose.msra.mxu0 %v756
  %806 = vmatprep.subr.mxu0 0.0
  %807 = vmatpush1.xpose.msra.mxu0 %v753
  %808 = vmatprep.subr.mxu0 0.0
  %809 = vmatpush2.xpose.msra.mxu0 0.0
  %810 = vmatprep.subr.mxu0 0.0
  %811 = vmatpush2.xpose.msra.mxu0 0.0
  %812 = vmatprep.subr.mxu0 0.0
  %813 = vmatpush2.xpose.msra.mxu0 0.0
  %814 = vmatprep.subr.mxu0 0.0
  %815 = vmatpush2.xpose.msra.mxu0 0.0
  %816 = vmatprep.subr.mxu0 0.0
  %817 = vmatpush2.xpose.msra.mxu0 0.0
  %818 = vmatprep.subr.mxu0 0.0
  %819 = vmatpush2.xpose.msra.mxu0 0.0
  %820 = vmatprep.subr.mxu0 0.0
  %821 = vmatpush2.xpose.msra.mxu0 0.0
  %822 = vmatprep.subr.mxu0 0.0
  %823 = vmatpush2.xpose.msra.mxu0 0.0
  %824 = vmatprep.subr.mxu0 0.0
  %825 = vmatpush2.xpose.msra.mxu0 0.0
  %826 = vmatprep.subr.mxu0 0.0
  %827 = vmatpush2.xpose.msra.mxu0 0.0
  %828 = vmatprep.subr.mxu0 0.0
  %829 = vmatpush2.xpose.msra.mxu0 0.0
  %830 = vmatprep.subr.mxu0 0.0
  %831 = vmatpush2.xpose.msra.mxu0 0.0
  %832 = vmatprep.subr.mxu0 0.0
  %833 = vmatpush2.xpose.msra.mxu0 0.0
  %834 = vmatprep.subr.mxu0 0.0
  %835 = vmatpush2.xpose.msra.mxu0 0.0
  %836 = vmatprep.subr.mxu0 0.0
  %837 = vmatpush2.xpose.msra.mxu0 0.0
  %838 = vmatprep.subr.mxu0 0.0
  %839 = vmatpush2.xpose.msra.mxu0 0.0
  %840 = vmatprep.mubr.f32.mxu0 0.0
  %841 = vmatmul.mubr.f32.gmra.mxu0 %v729
  %v842 = vpop.f32.mrf.mxu0
  %v843 = vadd.f32 0.0, %v842
  %v844 = vpop.f32.mrf.mxu0
  %845 = vmatprep.mubr.f32.mxu0 0.0
  %846 = vmatmul.mubr.f32.gmra.mxu0 %v732
  %v847 = vpop.f32.mrf.mxu0
  %v848 = vadd.f32 0.0, %v847
  %v849 = vpop.f32.mrf.mxu0
  %850 = vmatprep.mubr.f32.mxu0 0.0
  %851 = vmatmul.mubr.f32.gmra.mxu0 %v735
  %v852 = vpop.f32.mrf.mxu0
  %v853 = vadd.f32 0.0, %v852
  %v854 = vpop.f32.mrf.mxu0
  %855 = vmatprep.mubr.f32.mxu0 0.0
  %856 = vmatmul.mubr.f32.gmra.mxu0 %v738
  %v857 = vpop.f32.mrf.mxu0
  %v858 = vadd.f32 0.0, %v857
  %v859 = vpop.f32.mrf.mxu0
  %860 = vmatprep.mubr.f32.mxu0 0.0
  %861 = vmatmul.mubr.f32.gmra.mxu0 %v741
  %v862 = vpop.f32.mrf.mxu0
  %v863 = vadd.f32 0.0, %v862
  %v864 = vpop.f32.mrf.mxu0
  %865 = vmatprep.mubr.f32.mxu0 0.0
  %866 = vmatmul.mubr.f32.gmra.mxu0 %v744
  %v867 = vpop.f32.mrf.mxu0
  %v868 = vadd.f32 0.0, %v867
  %v869 = vpop.f32.mrf.mxu0
  %870 = vmatprep.mubr.f32.mxu0 0.0
  %871 = vmatmul.mubr.f32.gmra.mxu0 %v747
  %v872 = vpop.f32.mrf.mxu0
  %v873 = vadd.f32 0.0, %v872
  %v874 = vpop.f32.mrf.mxu0
  %875 = vmatprep.mubr.f32.mxu0 0.0
  %876 = vmatmul.mubr.f32.gmra.mxu0 %v750
  %v877 = vpop.f32.mrf.mxu0
  %v878 = vadd.f32 0.0, %v877
  %v879 = vpop.f32.mrf.mxu0
  %880 = vdwg.mxu0
  %v882 = vsel %vm727, %v719, 0
  %v885 = vsel %vm727, %v720, 0
  %v888 = vsel %vm727, %v721, 0
  %v891 = vsel %vm727, %v722, 0
  %v894 = vsel %vm727, %v723, 0
  %v897 = vsel %vm727, %v724, 0
  %v900 = vsel %vm727, %v725, 0
  %v903 = vsel %vm727, %v726, 0
  %v906 = vsel %vm727, %v519, 0
  %v909 = vsel %vm727, %v524, 0
  %v912 = vsel %vm727, %v529, 0
  %v915 = vsel %vm727, %v534, 0
  %v918 = vsel %vm727, %v539, 0
  %v921 = vsel %vm727, %v544, 0
  %v924 = vsel %vm727, %v549, 0
  %v927 = vsel %vm727, %v554, 0
  %929 = vmatprep.subr.mxu0 0.0
  %930 = vmatpush1.xpose.msra.mxu0 0.0
  %931 = vmatprep.subr.mxu0 0.0
  %932 = vmatpush1.xpose.msra.mxu0 0.0
  %933 = vmatprep.subr.mxu0 0.0
  %934 = vmatpush1.xpose.msra.mxu0 0.0
  %935 = vmatprep.subr.mxu0 0.0
  %936 = vmatpush1.xpose.msra.mxu0 0.0
  %937 = vmatprep.subr.mxu0 0.0
  %938 = vmatpush1.xpose.msra.mxu0 0.0
  %939 = vmatprep.subr.mxu0 0.0
  %940 = vmatpush1.xpose.msra.mxu0 0.0
  %941 = vmatprep.subr.mxu0 0.0
  %942 = vmatpush1.xpose.msra.mxu0 0.0
  %943 = vmatprep.subr.mxu0 0.0
  %944 = vmatpush1.xpose.msra.mxu0 0.0
  %945 = vmatprep.subr.mxu0 0.0
  %946 = vmatpush1.xpose.msra.mxu0 %v927
  %947 = vmatprep.subr.mxu0 0.0
  %948 = vmatpush1.xpose.msra.mxu0 %v924
  %949 = vmatprep.subr.mxu0 0.0
  %950 = vmatpush1.xpose.msra.mxu0 %v921
  %951 = vmatprep.subr.mxu0 0.0
  %952 = vmatpush1.xpose.msra.mxu0 %v918
  %953 = vmatprep.subr.mxu0 0.0
  %954 = vmatpush1.xpose.msra.mxu0 %v915
  %955 = vmatprep.subr.mxu0 0.0
  %956 = vmatpush1.xpose.msra.mxu0 %v912
  %957 = vmatprep.subr.mxu0 0.0
  %958 = vmatpush1.xpose.msra.mxu0 %v909
  %959 = vmatprep.subr.mxu0 0.0
  %960 = vmatpush1.xpose.msra.mxu0 %v906
  %961 = vmatprep.subr.mxu0 0.0
  %962 = vmatpush2.xpose.msra.mxu0 0.0
  %963 = vmatprep.subr.mxu0 0.0
  %964 = vmatpush2.xpose.msra.mxu0 0.0
  %965 = vmatprep.subr.mxu0 0.0
  %966 = vmatpush2.xpose.msra.mxu0 0.0
  %967 = vmatprep.subr.mxu0 0.0
  %968 = vmatpush2.xpose.msra.mxu0 0.0
  %969 = vmatprep.subr.mxu0 0.0
  %970 = vmatpush2.xpose.msra.mxu0 0.0
  %971 = vmatprep.subr.mxu0 0.0
  %972 = vmatpush2.xpose.msra.mxu0 0.0
  %973 = vmatprep.subr.mxu0 0.0
  %974 = vmatpush2.xpose.msra.mxu0 0.0
  %975 = vmatprep.subr.mxu0 0.0
  %976 = vmatpush2.xpose.msra.mxu0 0.0
  %977 = vmatprep.subr.mxu0 0.0
  %978 = vmatpush2.xpose.msra.mxu0 0.0
  %979 = vmatprep.subr.mxu0 0.0
  %980 = vmatpush2.xpose.msra.mxu0 0.0
  %981 = vmatprep.subr.mxu0 0.0
  %982 = vmatpush2.xpose.msra.mxu0 0.0
  %983 = vmatprep.subr.mxu0 0.0
  %984 = vmatpush2.xpose.msra.mxu0 0.0
  %985 = vmatprep.subr.mxu0 0.0
  %986 = vmatpush2.xpose.msra.mxu0 0.0
  %987 = vmatprep.subr.mxu0 0.0
  %988 = vmatpush2.xpose.msra.mxu0 0.0
  %989 = vmatprep.subr.mxu0 0.0
  %990 = vmatpush2.xpose.msra.mxu0 0.0
  %991 = vmatprep.subr.mxu0 0.0
  %992 = vmatpush2.xpose.msra.mxu0 0.0
  %993 = vmatprep.mubr.f32.mxu0 0.0
  %994 = vmatmul.mubr.f32.gmra.mxu0 %v882
  %v995 = vpop.f32.mrf.mxu0
  %v996 = vadd.f32 0.0, %v995
  %v997 = vpop.f32.mrf.mxu0
  %998 = vmatprep.mubr.f32.mxu0 0.0
  %999 = vmatmul.mubr.f32.gmra.mxu0 %v885
  %v1000 = vpop.f32.mrf.mxu0
  %v1001 = vadd.f32 0.0, %v1000
  %v1002 = vpop.f32.mrf.mxu0
  %1003 = vmatprep.mubr.f32.mxu0 0.0
  %1004 = vmatmul.mubr.f32.gmra.mxu0 %v888
  %v1005 = vpop.f32.mrf.mxu0
  %v1006 = vadd.f32 0.0, %v1005
  %v1007 = vpop.f32.mrf.mxu0
  %1008 = vmatprep.mubr.f32.mxu0 0.0
  %1009 = vmatmul.mubr.f32.gmra.mxu0 %v891
  %v1010 = vpop.f32.mrf.mxu0
  %v1011 = vadd.f32 0.0, %v1010
  %v1012 = vpop.f32.mrf.mxu0
  %1013 = vmatprep.mubr.f32.mxu0 0.0
  %1014 = vmatmul.mubr.f32.gmra.mxu0 %v894
  %v1015 = vpop.f32.mrf.mxu0
  %v1016 = vadd.f32 0.0, %v1015
  %v1017 = vpop.f32.mrf.mxu0
  %1018 = vmatprep.mubr.f32.mxu0 0.0
  %1019 = vmatmul.mubr.f32.gmra.mxu0 %v897
  %v1020 = vpop.f32.mrf.mxu0
  %v1021 = vadd.f32 0.0, %v1020
  %v1022 = vpop.f32.mrf.mxu0
  %1023 = vmatprep.mubr.f32.mxu0 0.0
  %1024 = vmatmul.mubr.f32.gmra.mxu0 %v900
  %v1025 = vpop.f32.mrf.mxu0
  %v1026 = vadd.f32 0.0, %v1025
  %v1027 = vpop.f32.mrf.mxu0
  %1028 = vmatprep.mubr.f32.mxu0 0.0
  %1029 = vmatmul.mubr.f32.gmra.mxu0 %v903
  %v1030 = vpop.f32.mrf.mxu0
  %v1031 = vadd.f32 0.0, %v1030
  %v1032 = vpop.f32.mrf.mxu0
  %1033 = vdwg.mxu0
  %v1034 = vld [vmem:[#allocation3] sm:$0xff]
  %v1035 = vld [vmem:[#allocation3 + $0x8] sm:$0xff]
  %v1036 = vld [vmem:[#allocation3 + $0x10] sm:$0xff]
  %v1037 = vld [vmem:[#allocation3 + $0x18] sm:$0xff]
  %v1038 = vld [vmem:[#allocation3 + $0x20] sm:$0xff]
  %v1039 = vld [vmem:[#allocation3 + $0x28] sm:$0xff]
  %v1040 = vld [vmem:[#allocation3 + $0x30] sm:$0xff]
  %v1041 = vld [vmem:[#allocation3 + $0x38] sm:$0xff]
  %v1042 = vld [vmem:[#allocation3 + $0x40] sm:$0xff]
  %v1043 = vld [vmem:[#allocation3 + $0x48] sm:$0xff]
  %v1044 = vld [vmem:[#allocation3 + $0x50] sm:$0xff]
  %v1045 = vld [vmem:[#allocation3 + $0x58] sm:$0xff]
  %v1046 = vld [vmem:[#allocation3 + $0x60] sm:$0xff]
  %v1047 = vld [vmem:[#allocation3 + $0x68] sm:$0xff]
  %v1048 = vld [vmem:[#allocation3 + $0x70] sm:$0xff]
  %v1049 = vld [vmem:[#allocation3 + $0x78] sm:$0xff]
  %vm1050 = vcmask 523264
  %v1051 = vsel %vm1050, %v843, -inf
  %1052 = vmax.xlane.f32.xlu0 %v1051
  %v1053 = vpop.xlane.xlu0 %1052
  %v1054 = vsel %vm1050, %v848, -inf
  %1055 = vmax.xlane.f32.xlu0 %v1054
  %v1056 = vpop.xlane.xlu0 %1055
  %v1057 = vsel %vm1050, %v853, -inf
  %1058 = vmax.xlane.f32.xlu0 %v1057
  %v1059 = vpop.xlane.xlu0 %1058
  %v1060 = vsel %vm1050, %v858, -inf
  %1061 = vmax.xlane.f32.xlu0 %v1060
  %v1062 = vpop.xlane.xlu0 %1061
  %v1063 = vsel %vm1050, %v863, -inf
  %1064 = vmax.xlane.f32.xlu0 %v1063
  %v1065 = vpop.xlane.xlu0 %1064
  %v1066 = vsel %vm1050, %v868, -inf
  %1067 = vmax.xlane.f32.xlu0 %v1066
  %v1068 = vpop.xlane.xlu0 %1067
  %v1069 = vsel %vm1050, %v873, -inf
  %1070 = vmax.xlane.f32.xlu0 %v1069
  %v1071 = vpop.xlane.xlu0 %1070
  %v1072 = vsel %vm1050, %v878, -inf
  %1073 = vmax.xlane.f32.xlu0 %v1072
  %v1074 = vpop.xlane.xlu0 %1073
  %v1075 = vsel %vm1050, %v996, -inf
  %1076 = vmax.xlane.f32.xlu0 %v1075
  %v1077 = vpop.xlane.xlu0 %1076
  %v1078 = vsel %vm1050, %v1001, -inf
  %1079 = vmax.xlane.f32.xlu0 %v1078
  %v1080 = vpop.xlane.xlu0 %1079
  %v1081 = vsel %vm1050, %v1006, -inf
  %1082 = vmax.xlane.f32.xlu0 %v1081
  %v1083 = vpop.xlane.xlu0 %1082
  %v1084 = vsel %vm1050, %v1011, -inf
  %1085 = vmax.xlane.f32.xlu0 %v1084
  %v1086 = vpop.xlane.xlu0 %1085
  %v1087 = vsel %vm1050, %v1016, -inf
  %1088 = vmax.xlane.f32.xlu0 %v1087
  %v1089 = vpop.xlane.xlu0 %1088
  %v1090 = vsel %vm1050, %v1021, -inf
  %1091 = vmax.xlane.f32.xlu0 %v1090
  %v1092 = vpop.xlane.xlu0 %1091
  %v1093 = vsel %vm1050, %v1026, -inf
  %1094 = vmax.xlane.f32.xlu0 %v1093
  %v1095 = vpop.xlane.xlu0 %1094
  %v1096 = vsel %vm1050, %v1031, -inf
  %1097 = vmax.xlane.f32.xlu0 %v1096
  %v1098 = vpop.xlane.xlu0 %1097
  %v1099 = vmax.f32 %v1034, %v1053
  %v1100 = vmax.f32 %v1035, %v1056
  %v1101 = vmax.f32 %v1036, %v1059
  %v1102 = vmax.f32 %v1037, %v1062
  %v1103 = vmax.f32 %v1038, %v1065
  %v1104 = vmax.f32 %v1039, %v1068
  %v1105 = vmax.f32 %v1040, %v1071
  %v1106 = vmax.f32 %v1041, %v1074
  %v1107 = vmax.f32 %v1042, %v1077
  %v1108 = vmax.f32 %v1043, %v1080
  %v1109 = vmax.f32 %v1044, %v1083
  %v1110 = vmax.f32 %v1045, %v1086
  %v1111 = vmax.f32 %v1046, %v1089
  %v1112 = vmax.f32 %v1047, %v1092
  %v1113 = vmax.f32 %v1048, %v1095
  %v1114 = vmax.f32 %v1049, %v1098
  %v1115 = vsub.f32 %v1034, %v1099
  %v1116 = vsub.f32 %v1035, %v1100
  %v1117 = vsub.f32 %v1036, %v1101
  %v1118 = vsub.f32 %v1037, %v1102
  %v1119 = vsub.f32 %v1038, %v1103
  %v1120 = vsub.f32 %v1039, %v1104
  %v1121 = vsub.f32 %v1040, %v1105
  %v1122 = vsub.f32 %v1041, %v1106
  %v1123 = vsub.f32 %v1042, %v1107
  %v1124 = vsub.f32 %v1043, %v1108
  %v1125 = vsub.f32 %v1044, %v1109
  %v1126 = vsub.f32 %v1045, %v1110
  %v1127 = vsub.f32 %v1046, %v1111
  %v1128 = vsub.f32 %v1047, %v1112
  %v1129 = vsub.f32 %v1048, %v1113
  %v1130 = vsub.f32 %v1049, %v1114
  %v1131 = vmul.f32 %v1115, 1.442695
  %v1132 = vpow.pop %v1131
  %v1133 = vmul.f32 %v1116, 1.442695
  %v1134 = vpow.pop %v1133
  %v1135 = vmul.f32 %v1117, 1.442695
  %v1136 = vpow.pop %v1135
  %v1137 = vmul.f32 %v1118, 1.442695
  %v1138 = vpow.pop %v1137
  %v1139 = vmul.f32 %v1119, 1.442695
  %v1140 = vpow.pop %v1139
  %v1141 = vmul.f32 %v1120, 1.442695
  %v1142 = vpow.pop %v1141
  %v1143 = vmul.f32 %v1121, 1.442695
  %v1144 = vpow.pop %v1143
  %v1145 = vmul.f32 %v1122, 1.442695
  %v1146 = vpow.pop %v1145
  %v1147 = vmul.f32 %v1123, 1.442695
  %v1148 = vpow.pop %v1147
  %v1149 = vmul.f32 %v1124, 1.442695
  %v1150 = vpow.pop %v1149
  %v1151 = vmul.f32 %v1125, 1.442695
  %v1152 = vpow.pop %v1151
  %v1153 = vmul.f32 %v1126, 1.442695
  %v1154 = vpow.pop %v1153
  %v1155 = vmul.f32 %v1127, 1.442695
  %v1156 = vpow.pop %v1155
  %v1157 = vmul.f32 %v1128, 1.442695
  %v1158 = vpow.pop %v1157
  %v1159 = vmul.f32 %v1129, 1.442695
  %v1160 = vpow.pop %v1159
  %v1161 = vmul.f32 %v1130, 1.442695
  %v1162 = vpow.pop %v1161
  %1164 = vset.pattern.permute.xlu0 0
  %1165 = vperm.xlu0 %1164, %v1099
  %v1166 = vpop.permute.xlu0 %1165
  %1169 = vset.pattern.permute.xlu0 0
  %1170 = vperm.xlu0 %1169, %v1100
  %v1171 = vpop.permute.xlu0 %1170
  %1174 = vset.pattern.permute.xlu0 0
  %1175 = vperm.xlu0 %1174, %v1101
  %v1176 = vpop.permute.xlu0 %1175
  %1179 = vset.pattern.permute.xlu0 0
  %1180 = vperm.xlu0 %1179, %v1102
  %v1181 = vpop.permute.xlu0 %1180
  %1184 = vset.pattern.permute.xlu0 0
  %1185 = vperm.xlu0 %1184, %v1103
  %v1186 = vpop.permute.xlu0 %1185
  %1189 = vset.pattern.permute.xlu0 0
  %1190 = vperm.xlu0 %1189, %v1104
  %v1191 = vpop.permute.xlu0 %1190
  %1194 = vset.pattern.permute.xlu0 0
  %1195 = vperm.xlu0 %1194, %v1105
  %v1196 = vpop.permute.xlu0 %1195
  %1199 = vset.pattern.permute.xlu0 0
  %1200 = vperm.xlu0 %1199, %v1106
  %v1201 = vpop.permute.xlu0 %1200
  %1204 = vset.pattern.permute.xlu0 0
  %1205 = vperm.xlu0 %1204, %v1107
  %v1206 = vpop.permute.xlu0 %1205
  %1209 = vset.pattern.permute.xlu0 0
  %1210 = vperm.xlu0 %1209, %v1108
  %v1211 = vpop.permute.xlu0 %1210
  %1214 = vset.pattern.permute.xlu0 0
  %1215 = vperm.xlu0 %1214, %v1109
  %v1216 = vpop.permute.xlu0 %1215
  %1219 = vset.pattern.permute.xlu0 0
  %1220 = vperm.xlu0 %1219, %v1110
  %v1221 = vpop.permute.xlu0 %1220
  %1224 = vset.pattern.permute.xlu0 0
  %1225 = vperm.xlu0 %1224, %v1111
  %v1226 = vpop.permute.xlu0 %1225
  %1229 = vset.pattern.permute.xlu0 0
  %1230 = vperm.xlu0 %1229, %v1112
  %v1231 = vpop.permute.xlu0 %1230
  %1234 = vset.pattern.permute.xlu0 0
  %1235 = vperm.xlu0 %1234, %v1113
  %v1236 = vpop.permute.xlu0 %1235
  %1239 = vset.pattern.permute.xlu0 0
  %1240 = vperm.xlu0 %1239, %v1114
  %v1241 = vpop.permute.xlu0 %1240
  %v1243 = vsub.f32 %v843, %v1166
  %v1244 = vsub.f32 %v848, %v1171
  %v1245 = vsub.f32 %v853, %v1176
  %v1246 = vsub.f32 %v858, %v1181
  %v1247 = vsub.f32 %v863, %v1186
  %v1248 = vsub.f32 %v868, %v1191
  %v1249 = vsub.f32 %v873, %v1196
  %v1250 = vsub.f32 %v878, %v1201
  %v1251 = vsub.f32 %v996, %v1206
  %v1252 = vsub.f32 %v1001, %v1211
  %v1253 = vsub.f32 %v1006, %v1216
  %v1254 = vsub.f32 %v1011, %v1221
  %v1255 = vsub.f32 %v1016, %v1226
  %v1256 = vsub.f32 %v1021, %v1231
  %v1257 = vsub.f32 %v1026, %v1236
  %v1258 = vsub.f32 %v1031, %v1241
  %v1259 = vmul.f32 %v1243, 1.442695
  %v1260 = vpow.pop %v1259
  %v1261 = vmul.f32 %v1244, 1.442695
  %v1262 = vpow.pop %v1261
  %v1263 = vmul.f32 %v1245, 1.442695
  %v1264 = vpow.pop %v1263
  %v1265 = vmul.f32 %v1246, 1.442695
  %v1266 = vpow.pop %v1265
  %v1267 = vmul.f32 %v1247, 1.442695
  %v1268 = vpow.pop %v1267
  %v1269 = vmul.f32 %v1248, 1.442695
  %v1270 = vpow.pop %v1269
  %v1271 = vmul.f32 %v1249, 1.442695
  %v1272 = vpow.pop %v1271
  %v1273 = vmul.f32 %v1250, 1.442695
  %v1274 = vpow.pop %v1273
  %v1275 = vmul.f32 %v1251, 1.442695
  %v1276 = vpow.pop %v1275
  %v1277 = vmul.f32 %v1252, 1.442695
  %v1278 = vpow.pop %v1277
  %v1279 = vmul.f32 %v1253, 1.442695
  %v1280 = vpow.pop %v1279
  %v1281 = vmul.f32 %v1254, 1.442695
  %v1282 = vpow.pop %v1281
  %v1283 = vmul.f32 %v1255, 1.442695
  %v1284 = vpow.pop %v1283
  %v1285 = vmul.f32 %v1256, 1.442695
  %v1286 = vpow.pop %v1285
  %v1287 = vmul.f32 %v1257, 1.442695
  %v1288 = vpow.pop %v1287
  %v1289 = vmul.f32 %v1258, 1.442695
  %v1290 = vpow.pop %v1289
  %v1291 = vld [vmem:[#allocation4] sm:$0xff]
  %v1292 = vld [vmem:[#allocation4 + $0x8] sm:$0xff]
  %v1293 = vld [vmem:[#allocation4 + $0x10] sm:$0xff]
  %v1294 = vld [vmem:[#allocation4 + $0x18] sm:$0xff]
  %v1295 = vld [vmem:[#allocation4 + $0x20] sm:$0xff]
  %v1296 = vld [vmem:[#allocation4 + $0x28] sm:$0xff]
  %v1297 = vld [vmem:[#allocation4 + $0x30] sm:$0xff]
  %v1298 = vld [vmem:[#allocation4 + $0x38] sm:$0xff]
  %v1299 = vld [vmem:[#allocation4 + $0x40] sm:$0xff]
  %v1300 = vld [vmem:[#allocation4 + $0x48] sm:$0xff]
  %v1301 = vld [vmem:[#allocation4 + $0x50] sm:$0xff]
  %v1302 = vld [vmem:[#allocation4 + $0x58] sm:$0xff]
  %v1303 = vld [vmem:[#allocation4 + $0x60] sm:$0xff]
  %v1304 = vld [vmem:[#allocation4 + $0x68] sm:$0xff]
  %v1305 = vld [vmem:[#allocation4 + $0x70] sm:$0xff]
  %v1306 = vld [vmem:[#allocation4 + $0x78] sm:$0xff]
  %v1307 = vmul.f32 %v1132, %v1291
  %v1308 = vmul.f32 %v1134, %v1292
  %v1309 = vmul.f32 %v1136, %v1293
  %v1310 = vmul.f32 %v1138, %v1294
  %v1311 = vmul.f32 %v1140, %v1295
  %v1312 = vmul.f32 %v1142, %v1296
  %v1313 = vmul.f32 %v1144, %v1297
  %v1314 = vmul.f32 %v1146, %v1298
  %v1315 = vmul.f32 %v1148, %v1299
  %v1316 = vmul.f32 %v1150, %v1300
  %v1317 = vmul.f32 %v1152, %v1301
  %v1318 = vmul.f32 %v1154, %v1302
  %v1319 = vmul.f32 %v1156, %v1303
  %v1320 = vmul.f32 %v1158, %v1304
  %v1321 = vmul.f32 %v1160, %v1305
  %v1322 = vmul.f32 %v1162, %v1306
  %v1323 = vsel %vm1050, %v1260, 0.0
  %1324 = vadd.xlane.f32.xlu0 %v1323
  %v1325 = vpop.xlane.xlu0 %1324
  %v1326 = vsel %vm1050, %v1262, 0.0
  %1327 = vadd.xlane.f32.xlu0 %v1326
  %v1328 = vpop.xlane.xlu0 %1327
  %v1329 = vsel %vm1050, %v1264, 0.0
  %1330 = vadd.xlane.f32.xlu0 %v1329
  %v1331 = vpop.xlane.xlu0 %1330
  %v1332 = vsel %vm1050, %v1266, 0.0
  %1333 = vadd.xlane.f32.xlu0 %v1332
  %v1334 = vpop.xlane.xlu0 %1333
  %v1335 = vsel %vm1050, %v1268, 0.0
  %1336 = vadd.xlane.f32.xlu0 %v1335
  %v1337 = vpop.xlane.xlu0 %1336
  %v1338 = vsel %vm1050, %v1270, 0.0
  %1339 = vadd.xlane.f32.xlu0 %v1338
  %v1340 = vpop.xlane.xlu0 %1339
  %v1341 = vsel %vm1050, %v1272, 0.0
  %1342 = vadd.xlane.f32.xlu0 %v1341
  %v1343 = vpop.xlane.xlu0 %1342
  %v1344 = vsel %vm1050, %v1274, 0.0
  %1345 = vadd.xlane.f32.xlu0 %v1344
  %v1346 = vpop.xlane.xlu0 %1345
  %v1347 = vsel %vm1050, %v1276, 0.0
  %1348 = vadd.xlane.f32.xlu0 %v1347
  %v1349 = vpop.xlane.xlu0 %1348
  %v1350 = vsel %vm1050, %v1278, 0.0
  %1351 = vadd.xlane.f32.xlu0 %v1350
  %v1352 = vpop.xlane.xlu0 %1351
  %v1353 = vsel %vm1050, %v1280, 0.0
  %1354 = vadd.xlane.f32.xlu0 %v1353
  %v1355 = vpop.xlane.xlu0 %1354
  %v1356 = vsel %vm1050, %v1282, 0.0
  %1357 = vadd.xlane.f32.xlu0 %v1356
  %v1358 = vpop.xlane.xlu0 %1357
  %v1359 = vsel %vm1050, %v1284, 0.0
  %1360 = vadd.xlane.f32.xlu0 %v1359
  %v1361 = vpop.xlane.xlu0 %1360
  %v1362 = vsel %vm1050, %v1286, 0.0
  %1363 = vadd.xlane.f32.xlu0 %v1362
  %v1364 = vpop.xlane.xlu0 %1363
  %v1365 = vsel %vm1050, %v1288, 0.0
  %1366 = vadd.xlane.f32.xlu0 %v1365
  %v1367 = vpop.xlane.xlu0 %1366
  %v1368 = vsel %vm1050, %v1290, 0.0
  %1369 = vadd.xlane.f32.xlu0 %v1368
  %v1370 = vpop.xlane.xlu0 %1369
  %v1371 = vadd.f32 %v1307, %v1325
  %v1372 = vadd.f32 %v1308, %v1328
  %v1373 = vadd.f32 %v1309, %v1331
  %v1374 = vadd.f32 %v1310, %v1334
  %v1375 = vadd.f32 %v1311, %v1337
  %v1376 = vadd.f32 %v1312, %v1340
  %v1377 = vadd.f32 %v1313, %v1343
  %v1378 = vadd.f32 %v1314, %v1346
  %v1379 = vadd.f32 %v1315, %v1349
  %v1380 = vadd.f32 %v1316, %v1352
  %v1381 = vadd.f32 %v1317, %v1355
  %v1382 = vadd.f32 %v1318, %v1358
  %v1383 = vadd.f32 %v1319, %v1361
  %v1384 = vadd.f32 %v1320, %v1364
  %v1385 = vadd.f32 %v1321, %v1367
  %v1386 = vadd.f32 %v1322, %v1370
  %vm1387 = vcmask 7168
  %1388 = vst.msk [vmem:[#allocation4] sm:$0xff] %vm1387, %v1371
  %1389 = vst.msk [vmem:[#allocation4 + $0x8] sm:$0xff] %vm1387, %v1372
  %1390 = vst.msk [vmem:[#allocation4 + $0x10] sm:$0xff] %vm1387, %v1373
  %1391 = vst.msk [vmem:[#allocation4 + $0x18] sm:$0xff] %vm1387, %v1374
  %1392 = vst.msk [vmem:[#allocation4 + $0x20] sm:$0xff] %vm1387, %v1375
  %1393 = vst.msk [vmem:[#allocation4 + $0x28] sm:$0xff] %vm1387, %v1376
  %1394 = vst.msk [vmem:[#allocation4 + $0x30] sm:$0xff] %vm1387, %v1377
  %1395 = vst.msk [vmem:[#allocation4 + $0x38] sm:$0xff] %vm1387, %v1378
  %1396 = vst.msk [vmem:[#allocation4 + $0x40] sm:$0xff] %vm1387, %v1379
  %1397 = vst.msk [vmem:[#allocation4 + $0x48] sm:$0xff] %vm1387, %v1380
  %1398 = vst.msk [vmem:[#allocation4 + $0x50] sm:$0xff] %vm1387, %v1381
  %1399 = vst.msk [vmem:[#allocation4 + $0x58] sm:$0xff] %vm1387, %v1382
  %1400 = vst.msk [vmem:[#allocation4 + $0x60] sm:$0xff] %vm1387, %v1383
  %1401 = vst.msk [vmem:[#allocation4 + $0x68] sm:$0xff] %vm1387, %v1384
  %1402 = vst.msk [vmem:[#allocation4 + $0x70] sm:$0xff] %vm1387, %v1385
  %1403 = vst.msk [vmem:[#allocation4 + $0x78] sm:$0xff] %vm1387, %v1386
  %v1405 = vsel %vm1050, %v1260, 0
  %v1408 = vsel %vm1050, %v1262, 0
  %v1411 = vsel %vm1050, %v1264, 0
  %v1414 = vsel %vm1050, %v1266, 0
  %v1417 = vsel %vm1050, %v1268, 0
  %v1420 = vsel %vm1050, %v1270, 0
  %v1423 = vsel %vm1050, %v1272, 0
  %v1426 = vsel %vm1050, %v1274, 0
  %1428 = vmatprep.subr.mxu0 0.0
  %1429 = vmatpush1.msra.mxu0 0.0
  %1430 = vmatprep.subr.mxu0 0.0
  %1431 = vmatpush1.msra.mxu0 0.0
  %1432 = vmatprep.subr.mxu0 0.0
  %1433 = vmatpush1.msra.mxu0 0.0
  %1434 = vmatprep.subr.mxu0 0.0
  %1435 = vmatpush1.msra.mxu0 0.0
  %1436 = vmatprep.subr.mxu0 0.0
  %1437 = vmatpush1.msra.mxu0 0.0
  %1438 = vmatprep.subr.mxu0 0.0
  %1439 = vmatpush1.msra.mxu0 0.0
  %1440 = vmatprep.subr.mxu0 0.0
  %1441 = vmatpush1.msra.mxu0 0.0
  %1442 = vmatprep.subr.mxu0 0.0
  %1443 = vmatpush1.msra.mxu0 0.0
  %1444 = vmatprep.subr.mxu0 0.0
  %1445 = vmatpush1.msra.mxu0 %v668
  %1446 = vmatprep.subr.mxu0 0.0
  %1447 = vmatpush1.msra.mxu0 %v663
  %1448 = vmatprep.subr.mxu0 0.0
  %1449 = vmatpush1.msra.mxu0 %v658
  %1450 = vmatprep.subr.mxu0 0.0
  %1451 = vmatpush1.msra.mxu0 %v653
  %1452 = vmatprep.subr.mxu0 0.0
  %1453 = vmatpush1.msra.mxu0 %v648
  %1454 = vmatprep.subr.mxu0 0.0
  %1455 = vmatpush1.msra.mxu0 %v643
  %1456 = vmatprep.subr.mxu0 0.0
  %1457 = vmatpush1.msra.mxu0 %v638
  %1458 = vmatprep.subr.mxu0 0.0
  %1459 = vmatpush1.msra.mxu0 %v633
  %1460 = vmatprep.subr.mxu0 0.0
  %1461 = vmatpush2.msra.mxu0 0.0
  %1462 = vmatprep.subr.mxu0 0.0
  %1463 = vmatpush2.msra.mxu0 0.0
  %1464 = vmatprep.subr.mxu0 0.0
  %1465 = vmatpush2.msra.mxu0 0.0
  %1466 = vmatprep.subr.mxu0 0.0
  %1467 = vmatpush2.msra.mxu0 0.0
  %1468 = vmatprep.subr.mxu0 0.0
  %1469 = vmatpush2.msra.mxu0 0.0
  %1470 = vmatprep.subr.mxu0 0.0
  %1471 = vmatpush2.msra.mxu0 0.0
  %1472 = vmatprep.subr.mxu0 0.0
  %1473 = vmatpush2.msra.mxu0 0.0
  %1474 = vmatprep.subr.mxu0 0.0
  %1475 = vmatpush2.msra.mxu0 0.0
  %1476 = vmatprep.subr.mxu0 0.0
  %1477 = vmatpush2.msra.mxu0 0.0
  %1478 = vmatprep.subr.mxu0 0.0
  %1479 = vmatpush2.msra.mxu0 0.0
  %1480 = vmatprep.subr.mxu0 0.0
  %1481 = vmatpush2.msra.mxu0 0.0
  %1482 = vmatprep.subr.mxu0 0.0
  %1483 = vmatpush2.msra.mxu0 0.0
  %1484 = vmatprep.subr.mxu0 0.0
  %1485 = vmatpush2.msra.mxu0 0.0
  %1486 = vmatprep.subr.mxu0 0.0
  %1487 = vmatpush2.msra.mxu0 0.0
  %1488 = vmatprep.subr.mxu0 0.0
  %1489 = vmatpush2.msra.mxu0 0.0
  %1490 = vmatprep.subr.mxu0 0.0
  %1491 = vmatpush2.msra.mxu0 0.0
  %1492 = vmatprep.mubr.f32.mxu0 0.0
  %1493 = vmatmul.mubr.f32.gmra.mxu0 %v1405
  %v1494 = vpop.f32.mrf.mxu0
  %v1495 = vadd.f32 0.0, %v1494
  %v1496 = vpop.f32.mrf.mxu0
  %1497 = vmatprep.mubr.f32.mxu0 0.0
  %1498 = vmatmul.mubr.f32.gmra.mxu0 %v1408
  %v1499 = vpop.f32.mrf.mxu0
  %v1500 = vadd.f32 0.0, %v1499
  %v1501 = vpop.f32.mrf.mxu0
  %1502 = vmatprep.mubr.f32.mxu0 0.0
  %1503 = vmatmul.mubr.f32.gmra.mxu0 %v1411
  %v1504 = vpop.f32.mrf.mxu0
  %v1505 = vadd.f32 0.0, %v1504
  %v1506 = vpop.f32.mrf.mxu0
  %1507 = vmatprep.mubr.f32.mxu0 0.0
  %1508 = vmatmul.mubr.f32.gmra.mxu0 %v1414
  %v1509 = vpop.f32.mrf.mxu0
  %v1510 = vadd.f32 0.0, %v1509
  %v1511 = vpop.f32.mrf.mxu0
  %1512 = vmatprep.mubr.f32.mxu0 0.0
  %1513 = vmatmul.mubr.f32.gmra.mxu0 %v1417
  %v1514 = vpop.f32.mrf.mxu0
  %v1515 = vadd.f32 0.0, %v1514
  %v1516 = vpop.f32.mrf.mxu0
  %1517 = vmatprep.mubr.f32.mxu0 0.0
  %1518 = vmatmul.mubr.f32.gmra.mxu0 %v1420
  %v1519 = vpop.f32.mrf.mxu0
  %v1520 = vadd.f32 0.0, %v1519
  %v1521 = vpop.f32.mrf.mxu0
  %1522 = vmatprep.mubr.f32.mxu0 0.0
  %1523 = vmatmul.mubr.f32.gmra.mxu0 %v1423
  %v1524 = vpop.f32.mrf.mxu0
  %v1525 = vadd.f32 0.0, %v1524
  %v1526 = vpop.f32.mrf.mxu0
  %1527 = vmatprep.mubr.f32.mxu0 0.0
  %1528 = vmatmul.mubr.f32.gmra.mxu0 %v1426
  %v1529 = vpop.f32.mrf.mxu0
  %v1530 = vadd.f32 0.0, %v1529
  %v1531 = vpop.f32.mrf.mxu0
  %1532 = vdwg.mxu0
  %v1534 = vsel %vm1050, %v1276, 0
  %v1537 = vsel %vm1050, %v1278, 0
  %v1540 = vsel %vm1050, %v1280, 0
  %v1543 = vsel %vm1050, %v1282, 0
  %v1546 = vsel %vm1050, %v1284, 0
  %v1549 = vsel %vm1050, %v1286, 0
  %v1552 = vsel %vm1050, %v1288, 0
  %v1555 = vsel %vm1050, %v1290, 0
  %1557 = vmatprep.subr.mxu0 0.0
  %1558 = vmatpush1.msra.mxu0 0.0
  %1559 = vmatprep.subr.mxu0 0.0
  %1560 = vmatpush1.msra.mxu0 0.0
  %1561 = vmatprep.subr.mxu0 0.0
  %1562 = vmatpush1.msra.mxu0 0.0
  %1563 = vmatprep.subr.mxu0 0.0
  %1564 = vmatpush1.msra.mxu0 0.0
  %1565 = vmatprep.subr.mxu0 0.0
  %1566 = vmatpush1.msra.mxu0 0.0
  %1567 = vmatprep.subr.mxu0 0.0
  %1568 = vmatpush1.msra.mxu0 0.0
  %1569 = vmatprep.subr.mxu0 0.0
  %1570 = vmatpush1.msra.mxu0 0.0
  %1571 = vmatprep.subr.mxu0 0.0
  %1572 = vmatpush1.msra.mxu0 0.0
  %1573 = vmatprep.subr.mxu0 0.0
  %1574 = vmatpush1.msra.mxu0 %v708
  %1575 = vmatprep.subr.mxu0 0.0
  %1576 = vmatpush1.msra.mxu0 %v703
  %1577 = vmatprep.subr.mxu0 0.0
  %1578 = vmatpush1.msra.mxu0 %v698
  %1579 = vmatprep.subr.mxu0 0.0
  %1580 = vmatpush1.msra.mxu0 %v693
  %1581 = vmatprep.subr.mxu0 0.0
  %1582 = vmatpush1.msra.mxu0 %v688
  %1583 = vmatprep.subr.mxu0 0.0
  %1584 = vmatpush1.msra.mxu0 %v683
  %1585 = vmatprep.subr.mxu0 0.0
  %1586 = vmatpush1.msra.mxu0 %v678
  %1587 = vmatprep.subr.mxu0 0.0
  %1588 = vmatpush1.msra.mxu0 %v673
  %1589 = vmatprep.subr.mxu0 0.0
  %1590 = vmatpush2.msra.mxu0 0.0
  %1591 = vmatprep.subr.mxu0 0.0
  %1592 = vmatpush2.msra.mxu0 0.0
  %1593 = vmatprep.subr.mxu0 0.0
  %1594 = vmatpush2.msra.mxu0 0.0
  %1595 = vmatprep.subr.mxu0 0.0
  %1596 = vmatpush2.msra.mxu0 0.0
  %1597 = vmatprep.subr.mxu0 0.0
  %1598 = vmatpush2.msra.mxu0 0.0
  %1599 = vmatprep.subr.mxu0 0.0
  %1600 = vmatpush2.msra.mxu0 0.0
  %1601 = vmatprep.subr.mxu0 0.0
  %1602 = vmatpush2.msra.mxu0 0.0
  %1603 = vmatprep.subr.mxu0 0.0
  %1604 = vmatpush2.msra.mxu0 0.0
  %1605 = vmatprep.subr.mxu0 0.0
  %1606 = vmatpush2.msra.mxu0 0.0
  %1607 = vmatprep.subr.mxu0 0.0
  %1608 = vmatpush2.msra.mxu0 0.0
  %1609 = vmatprep.subr.mxu0 0.0
  %1610 = vmatpush2.msra.mxu0 0.0
  %1611 = vmatprep.subr.mxu0 0.0
  %1612 = vmatpush2.msra.mxu0 0.0
  %1613 = vmatprep.subr.mxu0 0.0
  %1614 = vmatpush2.msra.mxu0 0.0
  %1615 = vmatprep.subr.mxu0 0.0
  %1616 = vmatpush2.msra.mxu0 0.0
  %1617 = vmatprep.subr.mxu0 0.0
  %1618 = vmatpush2.msra.mxu0 0.0
  %1619 = vmatprep.subr.mxu0 0.0
  %1620 = vmatpush2.msra.mxu0 0.0
  %1621 = vmatprep.mubr.f32.mxu0 0.0
  %1622 = vmatmul.mubr.f32.gmra.mxu0 %v1534
  %v1623 = vpop.f32.mrf.mxu0
  %v1624 = vadd.f32 0.0, %v1623
  %v1625 = vpop.f32.mrf.mxu0
  %1626 = vmatprep.mubr.f32.mxu0 0.0
  %1627 = vmatmul.mubr.f32.gmra.mxu0 %v1537
  %v1628 = vpop.f32.mrf.mxu0
  %v1629 = vadd.f32 0.0, %v1628
  %v1630 = vpop.f32.mrf.mxu0
  %1631 = vmatprep.mubr.f32.mxu0 0.0
  %1632 = vmatmul.mubr.f32.gmra.mxu0 %v1540
  %v1633 = vpop.f32.mrf.mxu0
  %v1634 = vadd.f32 0.0, %v1633
  %v1635 = vpop.f32.mrf.mxu0
  %1636 = vmatprep.mubr.f32.mxu0 0.0
  %1637 = vmatmul.mubr.f32.gmra.mxu0 %v1543
  %v1638 = vpop.f32.mrf.mxu0
  %v1639 = vadd.f32 0.0, %v1638
  %v1640 = vpop.f32.mrf.mxu0
  %1641 = vmatprep.mubr.f32.mxu0 0.0
  %1642 = vmatmul.mubr.f32.gmra.mxu0 %v1546
  %v1643 = vpop.f32.mrf.mxu0
  %v1644 = vadd.f32 0.0, %v1643
  %v1645 = vpop.f32.mrf.mxu0
  %1646 = vmatprep.mubr.f32.mxu0 0.0
  %1647 = vmatmul.mubr.f32.gmra.mxu0 %v1549
  %v1648 = vpop.f32.mrf.mxu0
  %v1649 = vadd.f32 0.0, %v1648
  %v1650 = vpop.f32.mrf.mxu0
  %1651 = vmatprep.mubr.f32.mxu0 0.0
  %1652 = vmatmul.mubr.f32.gmra.mxu0 %v1552
  %v1653 = vpop.f32.mrf.mxu0
  %v1654 = vadd.f32 0.0, %v1653
  %v1655 = vpop.f32.mrf.mxu0
  %1656 = vmatprep.mubr.f32.mxu0 0.0
  %1657 = vmatmul.mubr.f32.gmra.mxu0 %v1555
  %v1658 = vpop.f32.mrf.mxu0
  %v1659 = vadd.f32 0.0, %v1658
  %v1660 = vpop.f32.mrf.mxu0
  %1661 = vdwg.mxu0
  %v1662 = vld [vmem:[#allocation5] sm:$0xff]
  %v1663 = vld [vmem:[#allocation5 + $0x8] sm:$0xff]
  %v1664 = vld [vmem:[#allocation5 + $0x10] sm:$0xff]
  %v1665 = vld [vmem:[#allocation5 + $0x18] sm:$0xff]
  %v1666 = vld [vmem:[#allocation5 + $0x20] sm:$0xff]
  %v1667 = vld [vmem:[#allocation5 + $0x28] sm:$0xff]
  %v1668 = vld [vmem:[#allocation5 + $0x30] sm:$0xff]
  %v1669 = vld [vmem:[#allocation5 + $0x38] sm:$0xff]
  %v1670 = vld [vmem:[#allocation5 + $0x40] sm:$0xff]
  %v1671 = vld [vmem:[#allocation5 + $0x48] sm:$0xff]
  %v1672 = vld [vmem:[#allocation5 + $0x50] sm:$0xff]
  %v1673 = vld [vmem:[#allocation5 + $0x58] sm:$0xff]
  %v1674 = vld [vmem:[#allocation5 + $0x60] sm:$0xff]
  %v1675 = vld [vmem:[#allocation5 + $0x68] sm:$0xff]
  %v1676 = vld [vmem:[#allocation5 + $0x70] sm:$0xff]
  %v1677 = vld [vmem:[#allocation5 + $0x78] sm:$0xff]
  %1679 = vset.pattern.permute.xlu0 0
  %1680 = vperm.xlu0 %1679, %v1132
  %v1681 = vpop.permute.xlu0 %1680
  %1684 = vset.pattern.permute.xlu0 0
  %1685 = vperm.xlu0 %1684, %v1134
  %v1686 = vpop.permute.xlu0 %1685
  %1689 = vset.pattern.permute.xlu0 0
  %1690 = vperm.xlu0 %1689, %v1136
  %v1691 = vpop.permute.xlu0 %1690
  %1694 = vset.pattern.permute.xlu0 0
  %1695 = vperm.xlu0 %1694, %v1138
  %v1696 = vpop.permute.xlu0 %1695
  %1699 = vset.pattern.permute.xlu0 0
  %1700 = vperm.xlu0 %1699, %v1140
  %v1701 = vpop.permute.xlu0 %1700
  %1704 = vset.pattern.permute.xlu0 0
  %1705 = vperm.xlu0 %1704, %v1142
  %v1706 = vpop.permute.xlu0 %1705
  %1709 = vset.pattern.permute.xlu0 0
  %1710 = vperm.xlu0 %1709, %v1144
  %v1711 = vpop.permute.xlu0 %1710
  %1714 = vset.pattern.permute.xlu0 0
  %1715 = vperm.xlu0 %1714, %v1146
  %v1716 = vpop.permute.xlu0 %1715
  %1719 = vset.pattern.permute.xlu0 0
  %1720 = vperm.xlu0 %1719, %v1148
  %v1721 = vpop.permute.xlu0 %1720
  %1724 = vset.pattern.permute.xlu0 0
  %1725 = vperm.xlu0 %1724, %v1150
  %v1726 = vpop.permute.xlu0 %1725
  %1729 = vset.pattern.permute.xlu0 0
  %1730 = vperm.xlu0 %1729, %v1152
  %v1731 = vpop.permute.xlu0 %1730
  %1734 = vset.pattern.permute.xlu0 0
  %1735 = vperm.xlu0 %1734, %v1154
  %v1736 = vpop.permute.xlu0 %1735
  %1739 = vset.pattern.permute.xlu0 0
  %1740 = vperm.xlu0 %1739, %v1156
  %v1741 = vpop.permute.xlu0 %1740
  %1744 = vset.pattern.permute.xlu0 0
  %1745 = vperm.xlu0 %1744, %v1158
  %v1746 = vpop.permute.xlu0 %1745
  %1749 = vset.pattern.permute.xlu0 0
  %1750 = vperm.xlu0 %1749, %v1160
  %v1751 = vpop.permute.xlu0 %1750
  %1754 = vset.pattern.permute.xlu0 0
  %1755 = vperm.xlu0 %1754, %v1162
  %v1756 = vpop.permute.xlu0 %1755
  %v1758 = vmul.f32 %v1681, %v1662
  %v1759 = vmul.f32 %v1686, %v1663
  %v1760 = vmul.f32 %v1691, %v1664
  %v1761 = vmul.f32 %v1696, %v1665
  %v1762 = vmul.f32 %v1701, %v1666
  %v1763 = vmul.f32 %v1706, %v1667
  %v1764 = vmul.f32 %v1711, %v1668
  %v1765 = vmul.f32 %v1716, %v1669
  %v1766 = vmul.f32 %v1721, %v1670
  %v1767 = vmul.f32 %v1726, %v1671
  %v1768 = vmul.f32 %v1731, %v1672
  %v1769 = vmul.f32 %v1736, %v1673
  %v1770 = vmul.f32 %v1741, %v1674
  %v1771 = vmul.f32 %v1746, %v1675
  %v1772 = vmul.f32 %v1751, %v1676
  %v1773 = vmul.f32 %v1756, %v1677
  %v1774 = vadd.f32 %v1758, %v1495
  %v1775 = vadd.f32 %v1759, %v1500
  %v1776 = vadd.f32 %v1760, %v1505
  %v1777 = vadd.f32 %v1761, %v1510
  %v1778 = vadd.f32 %v1762, %v1515
  %v1779 = vadd.f32 %v1763, %v1520
  %v1780 = vadd.f32 %v1764, %v1525
  %v1781 = vadd.f32 %v1765, %v1530
  %v1782 = vadd.f32 %v1766, %v1624
  %v1783 = vadd.f32 %v1767, %v1629
  %v1784 = vadd.f32 %v1768, %v1634
  %v1785 = vadd.f32 %v1769, %v1639
  %v1786 = vadd.f32 %v1770, %v1644
  %v1787 = vadd.f32 %v1771, %v1649
  %v1788 = vadd.f32 %v1772, %v1654
  %v1789 = vadd.f32 %v1773, %v1659
  %1790 = vst.msk [vmem:[#allocation5] sm:$0xff] %vm363, %v1774
  %1791 = vst.msk [vmem:[#allocation5 + $0x8] sm:$0xff] %vm363, %v1775
  %1792 = vst.msk [vmem:[#allocation5 + $0x10] sm:$0xff] %vm363, %v1776
  %1793 = vst.msk [vmem:[#allocation5 + $0x18] sm:$0xff] %vm363, %v1777
  %1794 = vst.msk [vmem:[#allocation5 + $0x20] sm:$0xff] %vm363, %v1778
  %1795 = vst.msk [vmem:[#allocation5 + $0x28] sm:$0xff] %vm363, %v1779
  %1796 = vst.msk [vmem:[#allocation5 + $0x30] sm:$0xff] %vm363, %v1780
  %1797 = vst.msk [vmem:[#allocation5 + $0x38] sm:$0xff] %vm363, %v1781
  %1798 = vst.msk [vmem:[#allocation5 + $0x40] sm:$0xff] %vm363, %v1782
  %1799 = vst.msk [vmem:[#allocation5 + $0x48] sm:$0xff] %vm363, %v1783
  %1800 = vst.msk [vmem:[#allocation5 + $0x50] sm:$0xff] %vm363, %v1784
  %1801 = vst.msk [vmem:[#allocation5 + $0x58] sm:$0xff] %vm363, %v1785
  %1802 = vst.msk [vmem:[#allocation5 + $0x60] sm:$0xff] %vm363, %v1786
  %1803 = vst.msk [vmem:[#allocation5 + $0x68] sm:$0xff] %vm363, %v1787
  %1804 = vst.msk [vmem:[#allocation5 + $0x70] sm:$0xff] %vm363, %v1788
  %1805 = vst.msk [vmem:[#allocation5 + $0x78] sm:$0xff] %vm363, %v1789
  %1806 = vst.msk [vmem:[#allocation3] sm:$0xff] %vm1387, %v1099
  %1807 = vst.msk [vmem:[#allocation3 + $0x8] sm:$0xff] %vm1387, %v1100
  %1808 = vst.msk [vmem:[#allocation3 + $0x10] sm:$0xff] %vm1387, %v1101
  %1809 = vst.msk [vmem:[#allocation3 + $0x18] sm:$0xff] %vm1387, %v1102
  %1810 = vst.msk [vmem:[#allocation3 + $0x20] sm:$0xff] %vm1387, %v1103
  %1811 = vst.msk [vmem:[#allocation3 + $0x28] sm:$0xff] %vm1387, %v1104
  %1812 = vst.msk [vmem:[#allocation3 + $0x30] sm:$0xff] %vm1387, %v1105
  %1813 = vst.msk [vmem:[#allocation3 + $0x38] sm:$0xff] %vm1387, %v1106
  %1814 = vst.msk [vmem:[#allocation3 + $0x40] sm:$0xff] %vm1387, %v1107
  %1815 = vst.msk [vmem:[#allocation3 + $0x48] sm:$0xff] %vm1387, %v1108
  %1816 = vst.msk [vmem:[#allocation3 + $0x50] sm:$0xff] %vm1387, %v1109
  %1817 = vst.msk [vmem:[#allocation3 + $0x58] sm:$0xff] %vm1387, %v1110
  %1818 = vst.msk [vmem:[#allocation3 + $0x60] sm:$0xff] %vm1387, %v1111
  %1819 = vst.msk [vmem:[#allocation3 + $0x68] sm:$0xff] %vm1387, %v1112
  %1820 = vst.msk [vmem:[#allocation3 + $0x70] sm:$0xff] %vm1387, %v1113
  %1821 = vst.msk [vmem:[#allocation3 + $0x78] sm:$0xff] %vm1387, %v1114
  // Predicated region
  $region42: #{tpu_custom_call.1} parent=0 // pred_check
    %p1822 = pneg %p33
  $region43: #{tpu_custom_call.1} parent=0 // pred_check_branch
    %1824 = sbr.rel (%p1822) target = $region45
  $region44: #{tpu_custom_call.1} parent=0 // pred_region
    %v1825 = vld [vmem:[#allocation4] sm:$0xff]
    %v1826 = vld [vmem:[#allocation4 + $0x8] sm:$0xff]
    %v1827 = vld [vmem:[#allocation4 + $0x10] sm:$0xff]
    %v1828 = vld [vmem:[#allocation4 + $0x18] sm:$0xff]
    %v1829 = vld [vmem:[#allocation4 + $0x20] sm:$0xff]
    %v1830 = vld [vmem:[#allocation4 + $0x28] sm:$0xff]
    %v1831 = vld [vmem:[#allocation4 + $0x30] sm:$0xff]
    %v1832 = vld [vmem:[#allocation4 + $0x38] sm:$0xff]
    %v1833 = vld [vmem:[#allocation4 + $0x40] sm:$0xff]
    %v1834 = vld [vmem:[#allocation4 + $0x48] sm:$0xff]
    %v1835 = vld [vmem:[#allocation4 + $0x50] sm:$0xff]
    %v1836 = vld [vmem:[#allocation4 + $0x58] sm:$0xff]
    %v1837 = vld [vmem:[#allocation4 + $0x60] sm:$0xff]
    %v1838 = vld [vmem:[#allocation4 + $0x68] sm:$0xff]
    %v1839 = vld [vmem:[#allocation4 + $0x70] sm:$0xff]
    %v1840 = vld [vmem:[#allocation4 + $0x78] sm:$0xff]
    %v1841 = vrcp.pop %v1825
    %v1842 = vrcp.pop %v1826
    %v1843 = vrcp.pop %v1827
    %v1844 = vrcp.pop %v1828
    %v1845 = vrcp.pop %v1829
    %v1846 = vrcp.pop %v1830
    %v1847 = vrcp.pop %v1831
    %v1848 = vrcp.pop %v1832
    %v1849 = vrcp.pop %v1833
    %v1850 = vrcp.pop %v1834
    %v1851 = vrcp.pop %v1835
    %v1852 = vrcp.pop %v1836
    %v1853 = vrcp.pop %v1837
    %v1854 = vrcp.pop %v1838
    %v1855 = vrcp.pop %v1839
    %v1856 = vrcp.pop %v1840
    %v1857 = vld [vmem:[#allocation5] sm:$0xff]
    %v1858 = vld [vmem:[#allocation5 + $0x8] sm:$0xff]
    %v1859 = vld [vmem:[#allocation5 + $0x10] sm:$0xff]
    %v1860 = vld [vmem:[#allocation5 + $0x18] sm:$0xff]
    %v1861 = vld [vmem:[#allocation5 + $0x20] sm:$0xff]
    %v1862 = vld [vmem:[#allocation5 + $0x28] sm:$0xff]
    %v1863 = vld [vmem:[#allocation5 + $0x30] sm:$0xff]
    %v1864 = vld [vmem:[#allocation5 + $0x38] sm:$0xff]
    %v1865 = vld [vmem:[#allocation5 + $0x40] sm:$0xff]
    %v1866 = vld [vmem:[#allocation5 + $0x48] sm:$0xff]
    %v1867 = vld [vmem:[#allocation5 + $0x50] sm:$0xff]
    %v1868 = vld [vmem:[#allocation5 + $0x58] sm:$0xff]
    %v1869 = vld [vmem:[#allocation5 + $0x60] sm:$0xff]
    %v1870 = vld [vmem:[#allocation5 + $0x68] sm:$0xff]
    %v1871 = vld [vmem:[#allocation5 + $0x70] sm:$0xff]
    %v1872 = vld [vmem:[#allocation5 + $0x78] sm:$0xff]
    %1874 = vset.pattern.permute.xlu0 0
    %1875 = vperm.xlu0 %1874, %v1841
    %v1876 = vpop.permute.xlu0 %1875
    %1879 = vset.pattern.permute.xlu0 0
    %1880 = vperm.xlu0 %1879, %v1842
    %v1881 = vpop.permute.xlu0 %1880
    %1884 = vset.pattern.permute.xlu0 0
    %1885 = vperm.xlu0 %1884, %v1843
    %v1886 = vpop.permute.xlu0 %1885
    %1889 = vset.pattern.permute.xlu0 0
    %1890 = vperm.xlu0 %1889, %v1844
    %v1891 = vpop.permute.xlu0 %1890
    %1894 = vset.pattern.permute.xlu0 0
    %1895 = vperm.xlu0 %1894, %v1845
    %v1896 = vpop.permute.xlu0 %1895
    %1899 = vset.pattern.permute.xlu0 0
    %1900 = vperm.xlu0 %1899, %v1846
    %v1901 = vpop.permute.xlu0 %1900
    %1904 = vset.pattern.permute.xlu0 0
    %1905 = vperm.xlu0 %1904, %v1847
    %v1906 = vpop.permute.xlu0 %1905
    %1909 = vset.pattern.permute.xlu0 0
    %1910 = vperm.xlu0 %1909, %v1848
    %v1911 = vpop.permute.xlu0 %1910
    %1914 = vset.pattern.permute.xlu0 0
    %1915 = vperm.xlu0 %1914, %v1849
    %v1916 = vpop.permute.xlu0 %1915
    %1919 = vset.pattern.permute.xlu0 0
    %1920 = vperm.xlu0 %1919, %v1850
    %v1921 = vpop.permute.xlu0 %1920
    %1924 = vset.pattern.permute.xlu0 0
    %1925 = vperm.xlu0 %1924, %v1851
    %v1926 = vpop.permute.xlu0 %1925
    %1929 = vset.pattern.permute.xlu0 0
    %1930 = vperm.xlu0 %1929, %v1852
    %v1931 = vpop.permute.xlu0 %1930
    %1934 = vset.pattern.permute.xlu0 0
    %1935 = vperm.xlu0 %1934, %v1853
    %v1936 = vpop.permute.xlu0 %1935
    %1939 = vset.pattern.permute.xlu0 0
    %1940 = vperm.xlu0 %1939, %v1854
    %v1941 = vpop.permute.xlu0 %1940
    %1944 = vset.pattern.permute.xlu0 0
    %1945 = vperm.xlu0 %1944, %v1855
    %v1946 = vpop.permute.xlu0 %1945
    %1949 = vset.pattern.permute.xlu0 0
    %1950 = vperm.xlu0 %1949, %v1856
    %v1951 = vpop.permute.xlu0 %1950
    %v1953 = vmul.f32 %v1857, %v1876
    %v1954 = vmul.f32 %v1858, %v1881
    %v1955 = vmul.f32 %v1859, %v1886
    %v1956 = vmul.f32 %v1860, %v1891
    %v1957 = vmul.f32 %v1861, %v1896
    %v1958 = vmul.f32 %v1862, %v1901
    %v1959 = vmul.f32 %v1863, %v1906
    %v1960 = vmul.f32 %v1864, %v1911
    %v1961 = vmul.f32 %v1865, %v1916
    %v1962 = vmul.f32 %v1866, %v1921
    %v1963 = vmul.f32 %v1867, %v1926
    %v1964 = vmul.f32 %v1868, %v1931
    %v1965 = vmul.f32 %v1869, %v1936
    %v1966 = vmul.f32 %v1870, %v1941
    %v1967 = vmul.f32 %v1871, %v1946
    %v1968 = vmul.f32 %v1872, %v1951
    %s1969 = sld [smem:[#allocation6]]
    %v1970 = vstv %s1969
    %v1971 = vmul.f32 %v1970, %v1953
    %v1972 = vmul.f32 %v1970, %v1954
    %v1973 = vmul.f32 %v1970, %v1955
    %v1974 = vmul.f32 %v1970, %v1956
    %v1975 = vmul.f32 %v1970, %v1957
    %v1976 = vmul.f32 %v1970, %v1958
    %v1977 = vmul.f32 %v1970, %v1959
    %v1978 = vmul.f32 %v1970, %v1960
    %v1979 = vmul.f32 %v1970, %v1961
    %v1980 = vmul.f32 %v1970, %v1962
    %v1981 = vmul.f32 %v1970, %v1963
    %v1982 = vmul.f32 %v1970, %v1964
    %v1983 = vmul.f32 %v1970, %v1965
    %v1984 = vmul.f32 %v1970, %v1966
    %v1985 = vmul.f32 %v1970, %v1967
    %v1986 = vmul.f32 %v1970, %v1968
    %v1987 = vld [vmem:[%s0] sm:$0xff]
    %v1988 = vld [vmem:[%s0 + $0x8] sm:$0xff]
    %v1989 = vld [vmem:[%s0 + $0x10] sm:$0xff]
    %v1990 = vld [vmem:[%s0 + $0x18] sm:$0xff]
    %v1991 = vld [vmem:[%s0 + $0x20] sm:$0xff]
    %v1992 = vld [vmem:[%s0 + $0x28] sm:$0xff]
    %v1993 = vld [vmem:[%s0 + $0x30] sm:$0xff]
    %v1994 = vld [vmem:[%s0 + $0x38] sm:$0xff]
    %v1995 = vld [vmem:[%s0 + $0x40] sm:$0xff]
    %v1996 = vld [vmem:[%s0 + $0x48] sm:$0xff]
    %v1997 = vld [vmem:[%s0 + $0x50] sm:$0xff]
    %v1998 = vld [vmem:[%s0 + $0x58] sm:$0xff]
    %v1999 = vld [vmem:[%s0 + $0x60] sm:$0xff]
    %v2000 = vld [vmem:[%s0 + $0x68] sm:$0xff]
    %v2001 = vld [vmem:[%s0 + $0x70] sm:$0xff]
    %v2002 = vld [vmem:[%s0 + $0x78] sm:$0xff]
    %v2003 = vadd.f32 %v1971, %v1987
    %v2004 = vadd.f32 %v1972, %v1988
    %v2005 = vadd.f32 %v1973, %v1989
    %v2006 = vadd.f32 %v1974, %v1990
    %v2007 = vadd.f32 %v1975, %v1991
    %v2008 = vadd.f32 %v1976, %v1992
    %v2009 = vadd.f32 %v1977, %v1993
    %v2010 = vadd.f32 %v1978, %v1994
    %v2011 = vadd.f32 %v1979, %v1995
    %v2012 = vadd.f32 %v1980, %v1996
    %v2013 = vadd.f32 %v1981, %v1997
    %v2014 = vadd.f32 %v1982, %v1998
    %v2015 = vadd.f32 %v1983, %v1999
    %v2016 = vadd.f32 %v1984, %v2000
    %v2017 = vadd.f32 %v1985, %v2001
    %v2018 = vadd.f32 %v1986, %v2002
    %2019 = vst.msk [vmem:[%s9] sm:$0xff] %vm363, %v2003
    %2020 = vst.msk [vmem:[%s9 + $0x8] sm:$0xff] %vm363, %v2004
    %2021 = vst.msk [vmem:[%s9 + $0x10] sm:$0xff] %vm363, %v2005
    %2022 = vst.msk [vmem:[%s9 + $0x18] sm:$0xff] %vm363, %v2006
    %2023 = vst.msk [vmem:[%s9 + $0x20] sm:$0xff] %vm363, %v2007
    %2024 = vst.msk [vmem:[%s9 + $0x28] sm:$0xff] %vm363, %v2008
    %2025 = vst.msk [vmem:[%s9 + $0x30] sm:$0xff] %vm363, %v2009
    %2026 = vst.msk [vmem:[%s9 + $0x38] sm:$0xff] %vm363, %v2010
    %2027 = vst.msk [vmem:[%s9 + $0x40] sm:$0xff] %vm363, %v2011
    %2028 = vst.msk [vmem:[%s9 + $0x48] sm:$0xff] %vm363, %v2012
    %2029 = vst.msk [vmem:[%s9 + $0x50] sm:$0xff] %vm363, %v2013
    %2030 = vst.msk [vmem:[%s9 + $0x58] sm:$0xff] %vm363, %v2014
    %2031 = vst.msk [vmem:[%s9 + $0x60] sm:$0xff] %vm363, %v2015
    %2032 = vst.msk [vmem:[%s9 + $0x68] sm:$0xff] %vm363, %v2016
    %2033 = vst.msk [vmem:[%s9 + $0x70] sm:$0xff] %vm363, %v2017
    %2034 = vst.msk [vmem:[%s9 + $0x78] sm:$0xff] %vm363, %v2018
  $region45: #{tpu_custom_call.1} parent=0 // pred_fallthru
    _
  // Predicated region
  $region46: #{tpu_custom_call.1} parent=0 // pred_check
    _
  $region47: #{tpu_custom_call.1} parent=0 // pred_check_branch
    %2036 = sbr.rel (0) target = $region49
  $region48: #{tpu_custom_call.1} parent=0 // pred_region
    _
  $region49: #{tpu_custom_call.1} parent=0 // pred_fallthru
    _
  // Predicated region
  $region50: #{tpu_custom_call.1} parent=0 // pred_check
    _
  $region51: #{tpu_custom_call.1} parent=0 // pred_check_branch
    %2038 = sbr.rel (0) target = $region53
  $region52: #{tpu_custom_call.1} parent=0 // pred_region
    _
  $region53: #{tpu_custom_call.1} parent=0 // pred_fallthru
    _

</llo_original>
